<compile_context>
chip_gen: v7x
topology: tpu7x:2x2x1
jax: 0.10.0
libtpu: 0.0.40
codegen_flags: <defaults>
</compile_context>

<pallas_src>
import functools

import jax
import jax.numpy as jnp
from jax.experimental import pallas as pl
from jax.experimental.pallas import tpu as pltpu


def _round_up(n, m):
    return ((n + m - 1) // m) * m


def _pad128(d):
    return _round_up(d, 128)


def _leaky_relu(v):
    return jnp.where(v > 0, v, 0.2 * v)


# ----------------------------------------------------------------------------
# Kernel
# ----------------------------------------------------------------------------
def ae_kernel(x_ref,
              # encoder params (padded, weights bf16, biases f32)
              ew1, eb1, ew2, eb2, ew3, eb3, ew4, eb4,
              # decoder params
              dw1, db1, dw2, db2, dw3, db3, dw4, db4,
              # encoder_ params
              fw1, fb1, fw2, fb2, fw3, fb3, fw4, fb4,
              # packed output slab: [ out | z | z_hat ] (lane-dense, f32)
              out_ref):

    def lin(h, w_ref, b_ref):
        # bf16 on the MXU, f32 accumulation, f32 bias add.
        return jnp.dot(h.astype(jnp.bfloat16), w_ref[...],
                       preferred_element_type=jnp.float32) + b_ref[...]

    x = x_ref[...]

    # ---- encoder: dim_input -> 256 -> 128 -> 64 -> dim_feature (LeakyReLU 0.2)
    h = _leaky_relu(lin(x, ew1, eb1))
    h = _leaky_relu(lin(h, ew2, eb2))
    h = _leaky_relu(lin(h, ew3, eb3))
    z = _leaky_relu(lin(h, ew4, eb4))

    # ---- decoder: dim_feature -> 64 -> 128 -> 256 -> dim_input (Sigmoid) ----
    h = _leaky_relu(lin(z, dw1, db1))
    h = _leaky_relu(lin(h, dw2, db2))
    h = _leaky_relu(lin(h, dw3, db3))
    rec = jax.nn.sigmoid(lin(h, dw4, db4))

    # ---- encoder_: dim_input -> 256 -> 128 -> 64 -> dim_feature (LeakyReLU) --
    h = _leaky_relu(lin(rec, fw1, fb1))
    h = _leaky_relu(lin(h, fw2, fb2))
    h = _leaky_relu(lin(h, fw3, fb3))
    zhat = _leaky_relu(lin(h, fw4, fb4))

    # Single lane-dense packed store (each piece is 128-lane aligned).
    out_ref[...] = jnp.concatenate([rec, z, zhat], axis=-1).astype(out_ref.dtype)


# ----------------------------------------------------------------------------
# Parameters
# ----------------------------------------------------------------------------
def make_params(key, dim_input, dim_feature):
    """Deterministic init, PyTorch-equivalent shapes, stored transposed (in, out)."""
    enc_dims = [dim_input, 256, 128, 64, dim_feature]
    dec_dims = [dim_feature, 64, 128, 256, dim_input]
    enc2_dims = list(enc_dims)

    params = []
    for dims in (enc_dims, dec_dims, enc2_dims):
        for i in range(4):
            key, kw, kb = jax.random.split(key, 3)
            fan_in, fan_out = dims[i], dims[i + 1]
            w = jax.random.normal(kw, (fan_in, fan_out), jnp.float32) * (1.0 / jnp.sqrt(fan_in))
            b = jax.random.normal(kb, (1, fan_out), jnp.float32) * 0.01
            params += [w, b]
    return params


def _pad_and_cast_params(params):
    """Zero-pad every layer dim up to a multiple of 128 (lane-dense activations
    end-to-end), cast weights to bf16, keep biases f32."""
    out = []
    for i in range(0, len(params), 2):
        w, b = params[i], params[i + 1]
        in_d, out_d = w.shape
        ip, op = _pad128(in_d), _pad128(out_d)
        wp = jnp.zeros((ip, op), jnp.float32).at[:in_d, :out_d].set(w).astype(jnp.bfloat16)
        bp = jnp.zeros((1, op), jnp.float32).at[:, :out_d].set(b)
        out += [wp, bp]
    return out


# ----------------------------------------------------------------------------
# Wrapper
# ----------------------------------------------------------------------------
@functools.partial(jax.jit, static_argnames=("dim_feature", "tb"))
def autoencoder_forward(x, params, *, dim_feature, tb=256):
    assert tb % 8 == 0
    B, dim_input = x.shape
    din_p = _pad128(dim_input)
    dfeat_p = _pad128(dim_feature)
    slab_w = din_p + 2 * dfeat_p                     # [ out | z | z_hat ], lane-dense

    padded = _pad_and_cast_params(params)

    # Batch tiling: TB rows per grid step; pad batch to a multiple of TB.
    TB = min(tb, _round_up(B, 8))
    Bp = _round_up(B, TB)
    xp = jnp.zeros((Bp, din_p), jnp.float32).at[:B, :dim_input].set(x)

    grid = (Bp // TB,)

    in_specs = [pl.BlockSpec((TB, din_p), lambda i: (i, 0))]        # x: tiled over batch
    for p in padded:                                                # params: VMEM-resident
        in_specs.append(pl.BlockSpec(p.shape, lambda i: (0, 0)))
    out_spec = pl.BlockSpec((TB, slab_w), lambda i: (i, 0))

    # Advisory cost estimate for XLA's scheduler.
    flops = 2 * Bp * sum(int(w.shape[0]) * int(w.shape[1]) for w in padded[0::2])
    transcendentals = Bp * din_p                                    # sigmoid exps
    bytes_accessed = (xp.size * 4 + Bp * slab_w * 4
                      + sum(int(p.size) * p.dtype.itemsize for p in padded))

    slab = pl.pallas_call(
        ae_kernel,
        out_shape=jax.ShapeDtypeStruct((Bp, slab_w), jnp.float32),
        grid=grid,
        in_specs=in_specs,
        out_specs=out_spec,
        compiler_params=pltpu.CompilerParams(
            dimension_semantics=("parallel",)),                     # megacore on v7x
        cost_estimate=pl.CostEstimate(
            flops=flops, transcendentals=transcendentals, bytes_accessed=bytes_accessed),
    )(xp, *padded)

    out = slab[:B, :dim_input]
    z = slab[:B, din_p:din_p + dim_feature]
    zhat = slab[:B, din_p + dfeat_p:din_p + dfeat_p + dim_feature]
    return out, z, zhat


# ----------------------------------------------------------------------------
# Pure-JAX reference (mimics the bf16 MXU path for a tight tolerance)
# ----------------------------------------------------------------------------
def _reference_forward(x, params):
    def lrelu(v):
        return jnp.where(v > 0, v, 0.2 * v)

    def lin(h, w, b):
        return jnp.dot(h.astype(jnp.bfloat16), w.astype(jnp.bfloat16),
                       preferred_element_type=jnp.float32) + b

    def mlp(h, ps, final):
        for i in range(4):
            w, b = ps[2 * i], ps[2 * i + 1]
            h = lin(h, w, b)
            h = final(h) if i == 3 else lrelu(h)
        return h

    enc, dec, enc2 = params[0:8], params[8:16], params[16:24]
    z = mlp(x, enc, lrelu)
    out = mlp(z, dec, jax.nn.sigmoid)
    zhat = mlp(out, enc2, lrelu)
    return out, z, zhat


if __name__ == "__main__":
    # args.model_name = 'AE' (non-VAE branch), args.dim_input = 32, args.dim_feature = 16
    # TODO(synk): VAE branch (reparameterization + KLD) not implemented in this kernel.
    B, dim_input, dim_feature = 64, 32, 16

    key = jax.random.PRNGKey(0)
    key, kx = jax.random.split(key)
    x = jax.random.normal(kx, (B, dim_input), jnp.float32)

    params = make_params(jax.random.PRNGKey(0), dim_input, dim_feature)

    # tb=32 exercises a multi-step batch grid even at this small demo batch.
    out, z, z_hat = autoencoder_forward(x, params, dim_feature=dim_feature, tb=32)
    jax.block_until_ready((out, z, z_hat))

    ref_out, ref_z, ref_zhat = _reference_forward(x, params)
    assert out.shape == (B, dim_input) and z.shape == (B, dim_feature) and z_hat.shape == (B, dim_feature)
    assert jnp.allclose(out, ref_out, atol=1e-3), "output mismatch"
    assert jnp.allclose(z, ref_z, atol=1e-3), "z mismatch"
    assert jnp.allclose(z_hat, ref_zhat, atol=1e-3), "z_hat mismatch"

    print("KERNEL_OK")
</pallas_src>

<mosaic_0001>
module attributes {stable_mosaic.version = 11 : i64} {
  func.func @ae_kernel(%arg0: i32, %arg1: memref<32x128xf32, #tpu.memory_space<vmem>>, %arg2: memref<128x256xbf16, #tpu.memory_space<vmem>>, %arg3: memref<1x256xf32, #tpu.memory_space<vmem>>, %arg4: memref<256x128xbf16, #tpu.memory_space<vmem>>, %arg5: memref<1x128xf32, #tpu.memory_space<vmem>>, %arg6: memref<128x128xbf16, #tpu.memory_space<vmem>>, %arg7: memref<1x128xf32, #tpu.memory_space<vmem>>, %arg8: memref<128x128xbf16, #tpu.memory_space<vmem>>, %arg9: memref<1x128xf32, #tpu.memory_space<vmem>>, %arg10: memref<128x128xbf16, #tpu.memory_space<vmem>>, %arg11: memref<1x128xf32, #tpu.memory_space<vmem>>, %arg12: memref<128x128xbf16, #tpu.memory_space<vmem>>, %arg13: memref<1x128xf32, #tpu.memory_space<vmem>>, %arg14: memref<128x256xbf16, #tpu.memory_space<vmem>>, %arg15: memref<1x256xf32, #tpu.memory_space<vmem>>, %arg16: memref<256x128xbf16, #tpu.memory_space<vmem>>, %arg17: memref<1x128xf32, #tpu.memory_space<vmem>>, %arg18: memref<128x256xbf16, #tpu.memory_space<vmem>>, %arg19: memref<1x256xf32, #tpu.memory_space<vmem>>, %arg20: memref<256x128xbf16, #tpu.memory_space<vmem>>, %arg21: memref<1x128xf32, #tpu.memory_space<vmem>>, %arg22: memref<128x128xbf16, #tpu.memory_space<vmem>>, %arg23: memref<1x128xf32, #tpu.memory_space<vmem>>, %arg24: memref<128x128xbf16, #tpu.memory_space<vmem>>, %arg25: memref<1x128xf32, #tpu.memory_space<vmem>>, %arg26: memref<32x384xf32, #tpu.memory_space<vmem>>) attributes {dimension_semantics = [#tpu.dimension_semantics<parallel>], iteration_bounds = array<i64: 2>, scalar_prefetch = 0 : i64, scratch_operands = 0 : i64, tpu.core_type = #tpu.core_type<tc>, window_params = [{transform_indices = @transform_0, window_bounds = array<i64: 32, 128>}, {pipeline_mode = #tpu.pipeline_mode<synchronous>, transform_indices = @transform_1, window_bounds = array<i64: 128, 256>}, {pipeline_mode = #tpu.pipeline_mode<synchronous>, transform_indices = @transform_2, window_bounds = array<i64: 1, 256>}, {pipeline_mode = #tpu.pipeline_mode<synchronous>, transform_indices = @transform_3, window_bounds = array<i64: 256, 128>}, {pipeline_mode = #tpu.pipeline_mode<synchronous>, transform_indices = @transform_4, window_bounds = array<i64: 1, 128>}, {pipeline_mode = #tpu.pipeline_mode<synchronous>, transform_indices = @transform_5, window_bounds = array<i64: 128, 128>}, {pipeline_mode = #tpu.pipeline_mode<synchronous>, transform_indices = @transform_6, window_bounds = array<i64: 1, 128>}, {pipeline_mode = #tpu.pipeline_mode<synchronous>, transform_indices = @transform_7, window_bounds = array<i64: 128, 128>}, {pipeline_mode = #tpu.pipeline_mode<synchronous>, transform_indices = @transform_8, window_bounds = array<i64: 1, 128>}, {pipeline_mode = #tpu.pipeline_mode<synchronous>, transform_indices = @transform_9, window_bounds = array<i64: 128, 128>}, {pipeline_mode = #tpu.pipeline_mode<synchronous>, transform_indices = @transform_10, window_bounds = array<i64: 1, 128>}, {pipeline_mode = #tpu.pipeline_mode<synchronous>, transform_indices = @transform_11, window_bounds = array<i64: 128, 128>}, {pipeline_mode = #tpu.pipeline_mode<synchronous>, transform_indices = @transform_12, window_bounds = array<i64: 1, 128>}, {pipeline_mode = #tpu.pipeline_mode<synchronous>, transform_indices = @transform_13, window_bounds = array<i64: 128, 256>}, {pipeline_mode = #tpu.pipeline_mode<synchronous>, transform_indices = @transform_14, window_bounds = array<i64: 1, 256>}, {pipeline_mode = #tpu.pipeline_mode<synchronous>, transform_indices = @transform_15, window_bounds = array<i64: 256, 128>}, {pipeline_mode = #tpu.pipeline_mode<synchronous>, transform_indices = @transform_16, window_bounds = array<i64: 1, 128>}, {pipeline_mode = #tpu.pipeline_mode<synchronous>, transform_indices = @transform_17, window_bounds = array<i64: 128, 256>}, {pipeline_mode = #tpu.pipeline_mode<synchronous>, transform_indices = @transform_18, window_bounds = array<i64: 1, 256>}, {pipeline_mode = #tpu.pipeline_mode<synchronous>, transform_indices = @transform_19, window_bounds = array<i64: 256, 128>}, {pipeline_mode = #tpu.pipeline_mode<synchronous>, transform_indices = @transform_20, window_bounds = array<i64: 1, 128>}, {pipeline_mode = #tpu.pipeline_mode<synchronous>, transform_indices = @transform_21, window_bounds = array<i64: 128, 128>}, {pipeline_mode = #tpu.pipeline_mode<synchronous>, transform_indices = @transform_22, window_bounds = array<i64: 1, 128>}, {pipeline_mode = #tpu.pipeline_mode<synchronous>, transform_indices = @transform_23, window_bounds = array<i64: 128, 128>}, {pipeline_mode = #tpu.pipeline_mode<synchronous>, transform_indices = @transform_24, window_bounds = array<i64: 1, 128>}, {transform_indices = @transform_25, window_bounds = array<i64: 32, 384>}]} {
    %c0 = arith.constant 0 : index
    %c0_0 = arith.constant 0 : index
    %0 = vector.load %arg1[%c0, %c0_0] : memref<32x128xf32, #tpu.memory_space<vmem>>, vector<32x128xf32>
    %1 = arith.truncf %0 : vector<32x128xf32> to vector<32x128xbf16>
    %c0_1 = arith.constant 0 : index
    %c0_2 = arith.constant 0 : index
    %2 = vector.load %arg2[%c0_1, %c0_2] : memref<128x256xbf16, #tpu.memory_space<vmem>>, vector<128x256xbf16>
    %cst = arith.constant dense<0.000000e+00> : vector<32x256xf32>
    %3 = tpu.matmul %1, %2, %cst {dimension_numbers = #tpu.dot_dimension_numbers<[1], [0], [0], [1], [0, 0, 1, 1], [], []>} : vector<32x128xbf16>, vector<128x256xbf16>, vector<32x256xf32> -> vector<32x256xf32>
    %c0_3 = arith.constant 0 : index
    %c0_4 = arith.constant 0 : index
    %4 = vector.load %arg3[%c0_3, %c0_4] : memref<1x256xf32, #tpu.memory_space<vmem>>, vector<1x256xf32>
    %5 = vector.broadcast %4 : vector<1x256xf32> to vector<32x256xf32>
    %6 = arith.addf %3, %5 : vector<32x256xf32>
    %cst_5 = arith.constant 0.000000e+00 : f32
    %7 = vector.broadcast %cst_5 : f32 to vector<32x256xf32>
    %8 = arith.cmpf ogt, %6, %7 : vector<32x256xf32>
    %cst_6 = arith.constant 2.000000e-01 : f32
    %9 = vector.broadcast %cst_6 : f32 to vector<32x256xf32>
    %10 = arith.mulf %9, %6 : vector<32x256xf32>
    %11 = arith.select %8, %6, %10 : vector<32x256xi1>, vector<32x256xf32>
    %12 = arith.truncf %11 : vector<32x256xf32> to vector<32x256xbf16>
    %c0_7 = arith.constant 0 : index
    %c0_8 = arith.constant 0 : index
    %13 = vector.load %arg4[%c0_7, %c0_8] : memref<256x128xbf16, #tpu.memory_space<vmem>>, vector<256x128xbf16>
    %cst_9 = arith.constant dense<0.000000e+00> : vector<32x128xf32>
    %14 = tpu.matmul %12, %13, %cst_9 {dimension_numbers = #tpu.dot_dimension_numbers<[1], [0], [0], [1], [0, 0, 1, 1], [], []>} : vector<32x256xbf16>, vector<256x128xbf16>, vector<32x128xf32> -> vector<32x128xf32>
    %c0_10 = arith.constant 0 : index
    %c0_11 = arith.constant 0 : index
    %15 = vector.load %arg5[%c0_10, %c0_11] : memref<1x128xf32, #tpu.memory_space<vmem>>, vector<1x128xf32>
    %16 = vector.broadcast %15 : vector<1x128xf32> to vector<32x128xf32>
    %17 = arith.addf %14, %16 : vector<32x128xf32>
    %cst_12 = arith.constant 0.000000e+00 : f32
    %18 = vector.broadcast %cst_12 : f32 to vector<32x128xf32>
    %19 = arith.cmpf ogt, %17, %18 : vector<32x128xf32>
    %cst_13 = arith.constant 2.000000e-01 : f32
    %20 = vector.broadcast %cst_13 : f32 to vector<32x128xf32>
    %21 = arith.mulf %20, %17 : vector<32x128xf32>
    %22 = arith.select %19, %17, %21 : vector<32x128xi1>, vector<32x128xf32>
    %23 = arith.truncf %22 : vector<32x128xf32> to vector<32x128xbf16>
    %c0_14 = arith.constant 0 : index
    %c0_15 = arith.constant 0 : index
    %24 = vector.load %arg6[%c0_14, %c0_15] : memref<128x128xbf16, #tpu.memory_space<vmem>>, vector<128x128xbf16>
    %cst_16 = arith.constant dense<0.000000e+00> : vector<32x128xf32>
    %25 = tpu.matmul %23, %24, %cst_16 {dimension_numbers = #tpu.dot_dimension_numbers<[1], [0], [0], [1], [0, 0, 1, 1], [], []>} : vector<32x128xbf16>, vector<128x128xbf16>, vector<32x128xf32> -> vector<32x128xf32>
    %c0_17 = arith.constant 0 : index
    %c0_18 = arith.constant 0 : index
    %26 = vector.load %arg7[%c0_17, %c0_18] : memref<1x128xf32, #tpu.memory_space<vmem>>, vector<1x128xf32>
    %27 = vector.broadcast %26 : vector<1x128xf32> to vector<32x128xf32>
    %28 = arith.addf %25, %27 : vector<32x128xf32>
    %cst_19 = arith.constant 0.000000e+00 : f32
    %29 = vector.broadcast %cst_19 : f32 to vector<32x128xf32>
    %30 = arith.cmpf ogt, %28, %29 : vector<32x128xf32>
    %cst_20 = arith.constant 2.000000e-01 : f32
    %31 = vector.broadcast %cst_20 : f32 to vector<32x128xf32>
    %32 = arith.mulf %31, %28 : vector<32x128xf32>
    %33 = arith.select %30, %28, %32 : vector<32x128xi1>, vector<32x128xf32>
    %34 = arith.truncf %33 : vector<32x128xf32> to vector<32x128xbf16>
    %c0_21 = arith.constant 0 : index
    %c0_22 = arith.constant 0 : index
    %35 = vector.load %arg8[%c0_21, %c0_22] : memref<128x128xbf16, #tpu.memory_space<vmem>>, vector<128x128xbf16>
    %cst_23 = arith.constant dense<0.000000e+00> : vector<32x128xf32>
    %36 = tpu.matmul %34, %35, %cst_23 {dimension_numbers = #tpu.dot_dimension_numbers<[1], [0], [0], [1], [0, 0, 1, 1], [], []>} : vector<32x128xbf16>, vector<128x128xbf16>, vector<32x128xf32> -> vector<32x128xf32>
    %c0_24 = arith.constant 0 : index
    %c0_25 = arith.constant 0 : index
    %37 = vector.load %arg9[%c0_24, %c0_25] : memref<1x128xf32, #tpu.memory_space<vmem>>, vector<1x128xf32>
    %38 = vector.broadcast %37 : vector<1x128xf32> to vector<32x128xf32>
    %39 = arith.addf %36, %38 : vector<32x128xf32>
    %cst_26 = arith.constant 0.000000e+00 : f32
    %40 = vector.broadcast %cst_26 : f32 to vector<32x128xf32>
    %41 = arith.cmpf ogt, %39, %40 : vector<32x128xf32>
    %cst_27 = arith.constant 2.000000e-01 : f32
    %42 = vector.broadcast %cst_27 : f32 to vector<32x128xf32>
    %43 = arith.mulf %42, %39 : vector<32x128xf32>
    %44 = arith.select %41, %39, %43 : vector<32x128xi1>, vector<32x128xf32>
    %45 = arith.truncf %44 : vector<32x128xf32> to vector<32x128xbf16>
    %c0_28 = arith.constant 0 : index
    %c0_29 = arith.constant 0 : index
    %46 = vector.load %arg10[%c0_28, %c0_29] : memref<128x128xbf16, #tpu.memory_space<vmem>>, vector<128x128xbf16>
    %cst_30 = arith.constant dense<0.000000e+00> : vector<32x128xf32>
    %47 = tpu.matmul %45, %46, %cst_30 {dimension_numbers = #tpu.dot_dimension_numbers<[1], [0], [0], [1], [0, 0, 1, 1], [], []>} : vector<32x128xbf16>, vector<128x128xbf16>, vector<32x128xf32> -> vector<32x128xf32>
    %c0_31 = arith.constant 0 : index
    %c0_32 = arith.constant 0 : index
    %48 = vector.load %arg11[%c0_31, %c0_32] : memref<1x128xf32, #tpu.memory_space<vmem>>, vector<1x128xf32>
    %49 = vector.broadcast %48 : vector<1x128xf32> to vector<32x128xf32>
    %50 = arith.addf %47, %49 : vector<32x128xf32>
    %cst_33 = arith.constant 0.000000e+00 : f32
    %51 = vector.broadcast %cst_33 : f32 to vector<32x128xf32>
    %52 = arith.cmpf ogt, %50, %51 : vector<32x128xf32>
    %cst_34 = arith.constant 2.000000e-01 : f32
    %53 = vector.broadcast %cst_34 : f32 to vector<32x128xf32>
    %54 = arith.mulf %53, %50 : vector<32x128xf32>
    %55 = arith.select %52, %50, %54 : vector<32x128xi1>, vector<32x128xf32>
    %56 = arith.truncf %55 : vector<32x128xf32> to vector<32x128xbf16>
    %c0_35 = arith.constant 0 : index
    %c0_36 = arith.constant 0 : index
    %57 = vector.load %arg12[%c0_35, %c0_36] : memref<128x128xbf16, #tpu.memory_space<vmem>>, vector<128x128xbf16>
    %cst_37 = arith.constant dense<0.000000e+00> : vector<32x128xf32>
    %58 = tpu.matmul %56, %57, %cst_37 {dimension_numbers = #tpu.dot_dimension_numbers<[1], [0], [0], [1], [0, 0, 1, 1], [], []>} : vector<32x128xbf16>, vector<128x128xbf16>, vector<32x128xf32> -> vector<32x128xf32>
    %c0_38 = arith.constant 0 : index
    %c0_39 = arith.constant 0 : index
    %59 = vector.load %arg13[%c0_38, %c0_39] : memref<1x128xf32, #tpu.memory_space<vmem>>, vector<1x128xf32>
    %60 = vector.broadcast %59 : vector<1x128xf32> to vector<32x128xf32>
    %61 = arith.addf %58, %60 : vector<32x128xf32>
    %cst_40 = arith.constant 0.000000e+00 : f32
    %62 = vector.broadcast %cst_40 : f32 to vector<32x128xf32>
    %63 = arith.cmpf ogt, %61, %62 : vector<32x128xf32>
    %cst_41 = arith.constant 2.000000e-01 : f32
    %64 = vector.broadcast %cst_41 : f32 to vector<32x128xf32>
    %65 = arith.mulf %64, %61 : vector<32x128xf32>
    %66 = arith.select %63, %61, %65 : vector<32x128xi1>, vector<32x128xf32>
    %67 = arith.truncf %66 : vector<32x128xf32> to vector<32x128xbf16>
    %c0_42 = arith.constant 0 : index
    %c0_43 = arith.constant 0 : index
    %68 = vector.load %arg14[%c0_42, %c0_43] : memref<128x256xbf16, #tpu.memory_space<vmem>>, vector<128x256xbf16>
    %cst_44 = arith.constant dense<0.000000e+00> : vector<32x256xf32>
    %69 = tpu.matmul %67, %68, %cst_44 {dimension_numbers = #tpu.dot_dimension_numbers<[1], [0], [0], [1], [0, 0, 1, 1], [], []>} : vector<32x128xbf16>, vector<128x256xbf16>, vector<32x256xf32> -> vector<32x256xf32>
    %c0_45 = arith.constant 0 : index
    %c0_46 = arith.constant 0 : index
    %70 = vector.load %arg15[%c0_45, %c0_46] : memref<1x256xf32, #tpu.memory_space<vmem>>, vector<1x256xf32>
    %71 = vector.broadcast %70 : vector<1x256xf32> to vector<32x256xf32>
    %72 = arith.addf %69, %71 : vector<32x256xf32>
    %cst_47 = arith.constant 0.000000e+00 : f32
    %73 = vector.broadcast %cst_47 : f32 to vector<32x256xf32>
    %74 = arith.cmpf ogt, %72, %73 : vector<32x256xf32>
    %cst_48 = arith.constant 2.000000e-01 : f32
    %75 = vector.broadcast %cst_48 : f32 to vector<32x256xf32>
    %76 = arith.mulf %75, %72 : vector<32x256xf32>
    %77 = arith.select %74, %72, %76 : vector<32x256xi1>, vector<32x256xf32>
    %78 = arith.truncf %77 : vector<32x256xf32> to vector<32x256xbf16>
    %c0_49 = arith.constant 0 : index
    %c0_50 = arith.constant 0 : index
    %79 = vector.load %arg16[%c0_49, %c0_50] : memref<256x128xbf16, #tpu.memory_space<vmem>>, vector<256x128xbf16>
    %cst_51 = arith.constant dense<0.000000e+00> : vector<32x128xf32>
    %80 = tpu.matmul %78, %79, %cst_51 {dimension_numbers = #tpu.dot_dimension_numbers<[1], [0], [0], [1], [0, 0, 1, 1], [], []>} : vector<32x256xbf16>, vector<256x128xbf16>, vector<32x128xf32> -> vector<32x128xf32>
    %c0_52 = arith.constant 0 : index
    %c0_53 = arith.constant 0 : index
    %81 = vector.load %arg17[%c0_52, %c0_53] : memref<1x128xf32, #tpu.memory_space<vmem>>, vector<1x128xf32>
    %82 = vector.broadcast %81 : vector<1x128xf32> to vector<32x128xf32>
    %83 = arith.addf %80, %82 : vector<32x128xf32>
    %84 = arith.negf %83 : vector<32x128xf32>
    %85 = math.exp %84 : vector<32x128xf32>
    %cst_54 = arith.constant 1.000000e+00 : f32
    %86 = vector.broadcast %cst_54 : f32 to vector<32x128xf32>
    %87 = arith.addf %86, %85 : vector<32x128xf32>
    %88 = arith.divf %86, %87 : vector<32x128xf32>
    %89 = arith.truncf %88 : vector<32x128xf32> to vector<32x128xbf16>
    %c0_55 = arith.constant 0 : index
    %c0_56 = arith.constant 0 : index
    %90 = vector.load %arg18[%c0_55, %c0_56] : memref<128x256xbf16, #tpu.memory_space<vmem>>, vector<128x256xbf16>
    %cst_57 = arith.constant dense<0.000000e+00> : vector<32x256xf32>
    %91 = tpu.matmul %89, %90, %cst_57 {dimension_numbers = #tpu.dot_dimension_numbers<[1], [0], [0], [1], [0, 0, 1, 1], [], []>} : vector<32x128xbf16>, vector<128x256xbf16>, vector<32x256xf32> -> vector<32x256xf32>
    %c0_58 = arith.constant 0 : index
    %c0_59 = arith.constant 0 : index
    %92 = vector.load %arg19[%c0_58, %c0_59] : memref<1x256xf32, #tpu.memory_space<vmem>>, vector<1x256xf32>
    %93 = vector.broadcast %92 : vector<1x256xf32> to vector<32x256xf32>
    %94 = arith.addf %91, %93 : vector<32x256xf32>
    %cst_60 = arith.constant 0.000000e+00 : f32
    %95 = vector.broadcast %cst_60 : f32 to vector<32x256xf32>
    %96 = arith.cmpf ogt, %94, %95 : vector<32x256xf32>
    %cst_61 = arith.constant 2.000000e-01 : f32
    %97 = vector.broadcast %cst_61 : f32 to vector<32x256xf32>
    %98 = arith.mulf %97, %94 : vector<32x256xf32>
    %99 = arith.select %96, %94, %98 : vector<32x256xi1>, vector<32x256xf32>
    %100 = arith.truncf %99 : vector<32x256xf32> to vector<32x256xbf16>
    %c0_62 = arith.constant 0 : index
    %c0_63 = arith.constant 0 : index
    %101 = vector.load %arg20[%c0_62, %c0_63] : memref<256x128xbf16, #tpu.memory_space<vmem>>, vector<256x128xbf16>
    %cst_64 = arith.constant dense<0.000000e+00> : vector<32x128xf32>
    %102 = tpu.matmul %100, %101, %cst_64 {dimension_numbers = #tpu.dot_dimension_numbers<[1], [0], [0], [1], [0, 0, 1, 1], [], []>} : vector<32x256xbf16>, vector<256x128xbf16>, vector<32x128xf32> -> vector<32x128xf32>
    %c0_65 = arith.constant 0 : index
    %c0_66 = arith.constant 0 : index
    %103 = vector.load %arg21[%c0_65, %c0_66] : memref<1x128xf32, #tpu.memory_space<vmem>>, vector<1x128xf32>
    %104 = vector.broadcast %103 : vector<1x128xf32> to vector<32x128xf32>
    %105 = arith.addf %102, %104 : vector<32x128xf32>
    %cst_67 = arith.constant 0.000000e+00 : f32
    %106 = vector.broadcast %cst_67 : f32 to vector<32x128xf32>
    %107 = arith.cmpf ogt, %105, %106 : vector<32x128xf32>
    %cst_68 = arith.constant 2.000000e-01 : f32
    %108 = vector.broadcast %cst_68 : f32 to vector<32x128xf32>
    %109 = arith.mulf %108, %105 : vector<32x128xf32>
    %110 = arith.select %107, %105, %109 : vector<32x128xi1>, vector<32x128xf32>
    %111 = arith.truncf %110 : vector<32x128xf32> to vector<32x128xbf16>
    %c0_69 = arith.constant 0 : index
    %c0_70 = arith.constant 0 : index
    %112 = vector.load %arg22[%c0_69, %c0_70] : memref<128x128xbf16, #tpu.memory_space<vmem>>, vector<128x128xbf16>
    %cst_71 = arith.constant dense<0.000000e+00> : vector<32x128xf32>
    %113 = tpu.matmul %111, %112, %cst_71 {dimension_numbers = #tpu.dot_dimension_numbers<[1], [0], [0], [1], [0, 0, 1, 1], [], []>} : vector<32x128xbf16>, vector<128x128xbf16>, vector<32x128xf32> -> vector<32x128xf32>
    %c0_72 = arith.constant 0 : index
    %c0_73 = arith.constant 0 : index
    %114 = vector.load %arg23[%c0_72, %c0_73] : memref<1x128xf32, #tpu.memory_space<vmem>>, vector<1x128xf32>
    %115 = vector.broadcast %114 : vector<1x128xf32> to vector<32x128xf32>
    %116 = arith.addf %113, %115 : vector<32x128xf32>
    %cst_74 = arith.constant 0.000000e+00 : f32
    %117 = vector.broadcast %cst_74 : f32 to vector<32x128xf32>
    %118 = arith.cmpf ogt, %116, %117 : vector<32x128xf32>
    %cst_75 = arith.constant 2.000000e-01 : f32
    %119 = vector.broadcast %cst_75 : f32 to vector<32x128xf32>
    %120 = arith.mulf %119, %116 : vector<32x128xf32>
    %121 = arith.select %118, %116, %120 : vector<32x128xi1>, vector<32x128xf32>
    %122 = arith.truncf %121 : vector<32x128xf32> to vector<32x128xbf16>
    %c0_76 = arith.constant 0 : index
    %c0_77 = arith.constant 0 : index
    %123 = vector.load %arg24[%c0_76, %c0_77] : memref<128x128xbf16, #tpu.memory_space<vmem>>, vector<128x128xbf16>
    %cst_78 = arith.constant dense<0.000000e+00> : vector<32x128xf32>
    %124 = tpu.matmul %122, %123, %cst_78 {dimension_numbers = #tpu.dot_dimension_numbers<[1], [0], [0], [1], [0, 0, 1, 1], [], []>} : vector<32x128xbf16>, vector<128x128xbf16>, vector<32x128xf32> -> vector<32x128xf32>
    %c0_79 = arith.constant 0 : index
    %c0_80 = arith.constant 0 : index
    %125 = vector.load %arg25[%c0_79, %c0_80] : memref<1x128xf32, #tpu.memory_space<vmem>>, vector<1x128xf32>
    %126 = vector.broadcast %125 : vector<1x128xf32> to vector<32x128xf32>
    %127 = arith.addf %124, %126 : vector<32x128xf32>
    %cst_81 = arith.constant 0.000000e+00 : f32
    %128 = vector.broadcast %cst_81 : f32 to vector<32x128xf32>
    %129 = arith.cmpf ogt, %127, %128 : vector<32x128xf32>
    %cst_82 = arith.constant 2.000000e-01 : f32
    %130 = vector.broadcast %cst_82 : f32 to vector<32x128xf32>
    %131 = arith.mulf %130, %127 : vector<32x128xf32>
    %132 = arith.select %129, %127, %131 : vector<32x128xi1>, vector<32x128xf32>
    %133 = tpu.concatenate %88, %44, %132 in 1 : vector<32x128xf32>, vector<32x128xf32>, vector<32x128xf32> -> vector<32x384xf32>
    %c0_83 = arith.constant 0 : index
    %c0_84 = arith.constant 0 : index
    %134 = vector.load %arg26[%c0_83, %c0_84] : memref<32x384xf32, #tpu.memory_space<vmem>>, vector<32x384xf32>
    tpu.vector_store %arg26[%c0_83, %c0_84], %133 {strides = array<i32>} : memref<32x384xf32, #tpu.memory_space<vmem>>, vector<32x384xf32>,
    return
  }
  func.func @transform_0(%arg0: i32) -> (i32, i32) {
    %c0_i32 = arith.constant 0 : i32
    %c0_i32_0 = arith.constant 0 : i32
    return %arg0, %c0_i32 : i32, i32
  }
  func.func @transform_1(%arg0: i32) -> (i32, i32) {
    %c0_i32 = arith.constant 0 : i32
    %c0_i32_0 = arith.constant 0 : i32
    %c0_i32_1 = arith.constant 0 : i32
    return %c0_i32, %c0_i32_0 : i32, i32
  }
  func.func @transform_2(%arg0: i32) -> (i32, i32) {
    %c0_i32 = arith.constant 0 : i32
    %c0_i32_0 = arith.constant 0 : i32
    %c0_i32_1 = arith.constant 0 : i32
    return %c0_i32, %c0_i32_0 : i32, i32
  }
  func.func @transform_3(%arg0: i32) -> (i32, i32) {
    %c0_i32 = arith.constant 0 : i32
    %c0_i32_0 = arith.constant 0 : i32
    %c0_i32_1 = arith.constant 0 : i32
    return %c0_i32, %c0_i32_0 : i32, i32
  }
  func.func @transform_4(%arg0: i32) -> (i32, i32) {
    %c0_i32 = arith.constant 0 : i32
    %c0_i32_0 = arith.constant 0 : i32
    %c0_i32_1 = arith.constant 0 : i32
    return %c0_i32, %c0_i32_0 : i32, i32
  }
  func.func @transform_5(%arg0: i32) -> (i32, i32) {
    %c0_i32 = arith.constant 0 : i32
    %c0_i32_0 = arith.constant 0 : i32
    %c0_i32_1 = arith.constant 0 : i32
    return %c0_i32, %c0_i32_0 : i32, i32
  }
  func.func @transform_6(%arg0: i32) -> (i32, i32) {
    %c0_i32 = arith.constant 0 : i32
    %c0_i32_0 = arith.constant 0 : i32
    %c0_i32_1 = arith.constant 0 : i32
    return %c0_i32, %c0_i32_0 : i32, i32
  }
  func.func @transform_7(%arg0: i32) -> (i32, i32) {
    %c0_i32 = arith.constant 0 : i32
    %c0_i32_0 = arith.constant 0 : i32
    %c0_i32_1 = arith.constant 0 : i32
    return %c0_i32, %c0_i32_0 : i32, i32
  }
  func.func @transform_8(%arg0: i32) -> (i32, i32) {
    %c0_i32 = arith.constant 0 : i32
    %c0_i32_0 = arith.constant 0 : i32
    %c0_i32_1 = arith.constant 0 : i32
    return %c0_i32, %c0_i32_0 : i32, i32
  }
  func.func @transform_9(%arg0: i32) -> (i32, i32) {
    %c0_i32 = arith.constant 0 : i32
    %c0_i32_0 = arith.constant 0 : i32
    %c0_i32_1 = arith.constant 0 : i32
    return %c0_i32, %c0_i32_0 : i32, i32
  }
  func.func @transform_10(%arg0: i32) -> (i32, i32) {
    %c0_i32 = arith.constant 0 : i32
    %c0_i32_0 = arith.constant 0 : i32
    %c0_i32_1 = arith.constant 0 : i32
    return %c0_i32, %c0_i32_0 : i32, i32
  }
  func.func @transform_11(%arg0: i32) -> (i32, i32) {
    %c0_i32 = arith.constant 0 : i32
    %c0_i32_0 = arith.constant 0 : i32
    %c0_i32_1 = arith.constant 0 : i32
    return %c0_i32, %c0_i32_0 : i32, i32
  }
  func.func @transform_12(%arg0: i32) -> (i32, i32) {
    %c0_i32 = arith.constant 0 : i32
    %c0_i32_0 = arith.constant 0 : i32
    %c0_i32_1 = arith.constant 0 : i32
    return %c0_i32, %c0_i32_0 : i32, i32
  }
  func.func @transform_13(%arg0: i32) -> (i32, i32) {
    %c0_i32 = arith.constant 0 : i32
    %c0_i32_0 = arith.constant 0 : i32
    %c0_i32_1 = arith.constant 0 : i32
    return %c0_i32, %c0_i32_0 : i32, i32
  }
  func.func @transform_14(%arg0: i32) -> (i32, i32) {
    %c0_i32 = arith.constant 0 : i32
    %c0_i32_0 = arith.constant 0 : i32
    %c0_i32_1 = arith.constant 0 : i32
    return %c0_i32, %c0_i32_0 : i32, i32
  }
  func.func @transform_15(%arg0: i32) -> (i32, i32) {
    %c0_i32 = arith.constant 0 : i32
    %c0_i32_0 = arith.constant 0 : i32
    %c0_i32_1 = arith.constant 0 : i32
    return %c0_i32, %c0_i32_0 : i32, i32
  }
  func.func @transform_16(%arg0: i32) -> (i32, i32) {
    %c0_i32 = arith.constant 0 : i32
    %c0_i32_0 = arith.constant 0 : i32
    %c0_i32_1 = arith.constant 0 : i32
    return %c0_i32, %c0_i32_0 : i32, i32
  }
  func.func @transform_17(%arg0: i32) -> (i32, i32) {
    %c0_i32 = arith.constant 0 : i32
    %c0_i32_0 = arith.constant 0 : i32
    %c0_i32_1 = arith.constant 0 : i32
    return %c0_i32, %c0_i32_0 : i32, i32
  }
  func.func @transform_18(%arg0: i32) -> (i32, i32) {
    %c0_i32 = arith.constant 0 : i32
    %c0_i32_0 = arith.constant 0 : i32
    %c0_i32_1 = arith.constant 0 : i32
    return %c0_i32, %c0_i32_0 : i32, i32
  }
  func.func @transform_19(%arg0: i32) -> (i32, i32) {
    %c0_i32 = arith.constant 0 : i32
    %c0_i32_0 = arith.constant 0 : i32
    %c0_i32_1 = arith.constant 0 : i32
    return %c0_i32, %c0_i32_0 : i32, i32
  }
  func.func @transform_20(%arg0: i32) -> (i32, i32) {
    %c0_i32 = arith.constant 0 : i32
    %c0_i32_0 = arith.constant 0 : i32
    %c0_i32_1 = arith.constant 0 : i32
    return %c0_i32, %c0_i32_0 : i32, i32
  }
  func.func @transform_21(%arg0: i32) -> (i32, i32) {
    %c0_i32 = arith.constant 0 : i32
    %c0_i32_0 = arith.constant 0 : i32
    %c0_i32_1 = arith.constant 0 : i32
    return %c0_i32, %c0_i32_0 : i32, i32
  }
  func.func @transform_22(%arg0: i32) -> (i32, i32) {
    %c0_i32 = arith.constant 0 : i32
    %c0_i32_0 = arith.constant 0 : i32
    %c0_i32_1 = arith.constant 0 : i32
    return %c0_i32, %c0_i32_0 : i32, i32
  }
  func.func @transform_23(%arg0: i32) -> (i32, i32) {
    %c0_i32 = arith.constant 0 : i32
    %c0_i32_0 = arith.constant 0 : i32
    %c0_i32_1 = arith.constant 0 : i32
    return %c0_i32, %c0_i32_0 : i32, i32
  }
  func.func @transform_24(%arg0: i32) -> (i32, i32) {
    %c0_i32 = arith.constant 0 : i32
    %c0_i32_0 = arith.constant 0 : i32
    %c0_i32_1 = arith.constant 0 : i32
    return %c0_i32, %c0_i32_0 : i32, i32
  }
  func.func @transform_25(%arg0: i32) -> (i32, i32) {
    %c0_i32 = arith.constant 0 : i32
    %c0_i32_0 = arith.constant 0 : i32
    return %arg0, %c0_i32 : i32, i32
  }
}

</mosaic_0001>

<llo_original>
// kernel: autoencoder_forward.1
$region0: #{autoencoder_forward.1}
  #allocation0 [shape = 'u32[]', space=smem, size = 0x4, offset = 0x4, fixed_abs, tag = 'smem constant byte address 0x4 - core index']
  #allocation1 [shape = 'u32[144,128]{1,0:T(1,128)}', space=vmem, size = 0x12000, scoped, tag = 'internal scratch']
  %s0 = inlined_call_operand.vmem [shape: f32[64,128], index: 0, kind: input, shape index: {}]
  %s1 = inlined_call_operand.vmem [shape: bf16[128,256], index: 1, kind: input, shape index: {}]
  %s2 = inlined_call_operand.vmem [shape: f32[1,256], index: 2, kind: input, shape index: {}]
  %s3 = inlined_call_operand.vmem [shape: bf16[256,128], index: 3, kind: input, shape index: {}]
  %s4 = inlined_call_operand.vmem [shape: f32[1,128], index: 4, kind: input, shape index: {}]
  %s5 = inlined_call_operand.vmem [shape: bf16[128,128], index: 5, kind: input, shape index: {}]
  %s6 = inlined_call_operand.vmem [shape: f32[1,128], index: 6, kind: input, shape index: {}]
  %s7 = inlined_call_operand.vmem [shape: bf16[128,128], index: 7, kind: input, shape index: {}]
  %s8 = inlined_call_operand.vmem [shape: f32[1,128], index: 8, kind: input, shape index: {}]
  %s9 = inlined_call_operand.vmem [shape: bf16[128,128], index: 9, kind: input, shape index: {}]
  %s10 = inlined_call_operand.vmem [shape: f32[1,128], index: 10, kind: input, shape index: {}]
  %s11 = inlined_call_operand.vmem [shape: bf16[128,128], index: 11, kind: input, shape index: {}]
  %s12 = inlined_call_operand.vmem [shape: f32[1,128], index: 12, kind: input, shape index: {}]
  %s13 = inlined_call_operand.vmem [shape: bf16[128,256], index: 13, kind: input, shape index: {}]
  %s14 = inlined_call_operand.vmem [shape: f32[1,256], index: 14, kind: input, shape index: {}]
  %s15 = inlined_call_operand.vmem [shape: bf16[256,128], index: 15, kind: input, shape index: {}]
  %s16 = inlined_call_operand.vmem [shape: f32[1,128], index: 16, kind: input, shape index: {}]
  %s17 = inlined_call_operand.vmem [shape: bf16[128,256], index: 17, kind: input, shape index: {}]
  %s18 = inlined_call_operand.vmem [shape: f32[1,256], index: 18, kind: input, shape index: {}]
  %s19 = inlined_call_operand.vmem [shape: bf16[256,128], index: 19, kind: input, shape index: {}]
  %s20 = inlined_call_operand.vmem [shape: f32[1,128], index: 20, kind: input, shape index: {}]
  %s21 = inlined_call_operand.vmem [shape: bf16[128,128], index: 21, kind: input, shape index: {}]
  %s22 = inlined_call_operand.vmem [shape: f32[1,128], index: 22, kind: input, shape index: {}]
  %s23 = inlined_call_operand.vmem [shape: bf16[128,128], index: 23, kind: input, shape index: {}]
  %s24 = inlined_call_operand.vmem [shape: f32[1,128], index: 24, kind: input, shape index: {}]
  %s25 = inlined_call_operand.vmem [shape: f32[64,384], index: 25, kind: output, shape index: {}]
  %s26 = sld [smem:[#allocation0]]
  $region133: #{autoencoder_forward.1} parent=0
    _
  %s28 = ssub.s32 1, %s26
  %s29 = scalar_select 0, %s28, %s26
  loop: start=0, step=1, limit=4
  $region2: #{autoencoder_forward.1} parent=0 // loop_pre_header
    _
  $region3: #{autoencoder_forward.1} parent=0 // loop_header
    %s31 = sphi 0, %s35
    %p32 = scmp.ge.s32.totalorder %s31, 4
    %s41 = sphi 0, %s43
    %s44 = sphi 0, %s41
    %s45 = sphi 0, %s44
    %s61 = sphi 0, %s45
    %s65 = sphi 0, %s65
    %s67 = sphi 0, %s65
    %s68 = sphi 0, %s67
    %s82 = sphi 0, %s68
    %s86 = sphi 0, %s86
    %s88 = sphi 0, %s86
    %s89 = sphi 0, %s88
    %s103 = sphi 0, %s89
    %s107 = sphi 0, %s107
    %s109 = sphi 0, %s107
    %s110 = sphi 0, %s109
    %s124 = sphi 0, %s110
    %s128 = sphi 0, %s128
    %s130 = sphi 0, %s128
    %s131 = sphi 0, %s130
    %s145 = sphi 0, %s131
    %s149 = sphi 0, %s149
    %s151 = sphi 0, %s149
    %s152 = sphi 0, %s151
    %s166 = sphi 0, %s152
    %s170 = sphi 0, %s170
    %s172 = sphi 0, %s170
    %s173 = sphi 0, %s172
    %s187 = sphi 0, %s173
    %s191 = sphi 0, %s191
    %s193 = sphi 0, %s191
    %s194 = sphi 0, %s193
    %s208 = sphi 0, %s194
    %s212 = sphi 0, %s212
    %s214 = sphi 0, %s212
    %s215 = sphi 0, %s214
    %s229 = sphi 0, %s215
    %s233 = sphi 0, %s233
    %s235 = sphi 0, %s233
    %s236 = sphi 0, %s235
    %s250 = sphi 0, %s236
    %s254 = sphi 0, %s254
    %s256 = sphi 0, %s254
    %s257 = sphi 0, %s256
    %s271 = sphi 0, %s257
    %s275 = sphi 0, %s275
    %s277 = sphi 0, %s275
    %s278 = sphi 0, %s277
    %s292 = sphi 0, %s278
    %s296 = sphi 0, %s296
    %s298 = sphi 0, %s296
    %s299 = sphi 0, %s298
    %s313 = sphi 0, %s299
    %s317 = sphi 0, %s317
    %s319 = sphi 0, %s317
    %s320 = sphi 0, %s319
    %s334 = sphi 0, %s320
    %s338 = sphi 0, %s338
    %s340 = sphi 0, %s338
    %s341 = sphi 0, %s340
    %s355 = sphi 0, %s341
    %s359 = sphi 0, %s359
    %s361 = sphi 0, %s359
    %s362 = sphi 0, %s361
    %s376 = sphi 0, %s362
    %s380 = sphi 0, %s380
    %s382 = sphi 0, %s380
    %s383 = sphi 0, %s382
    %s397 = sphi 0, %s383
    %s401 = sphi 0, %s401
    %s403 = sphi 0, %s401
    %s404 = sphi 0, %s403
    %s418 = sphi 0, %s404
    %s422 = sphi 0, %s422
    %s424 = sphi 0, %s422
    %s425 = sphi 0, %s424
    %s439 = sphi 0, %s425
    %s443 = sphi 0, %s443
    %s445 = sphi 0, %s443
    %s446 = sphi 0, %s445
    %s460 = sphi 0, %s446
    %s464 = sphi 0, %s464
    %s466 = sphi 0, %s464
    %s467 = sphi 0, %s466
    %s481 = sphi 0, %s467
    %s485 = sphi 0, %s485
    %s487 = sphi 0, %s485
    %s488 = sphi 0, %s487
    %s502 = sphi 0, %s488
    %s506 = sphi 0, %s506
    %s508 = sphi 0, %s506
    %s509 = sphi 0, %s508
    %s523 = sphi 0, %s509
    %s527 = sphi 0, %s527
    %s529 = sphi 0, %s527
    %s530 = sphi 0, %s529
    %s544 = sphi 0, %s530
    %s548 = sphi 0, %s548
    %s550 = sphi 0, %s548
    %s551 = sphi 0, %s550
    %s565 = sphi 0, %s551
    %s571 = sphi 0, %s573
    %s574 = sphi 0, %s571
    %s575 = sphi 0, %s574
    %s591 = sphi 0, %s575
  $region4: #{autoencoder_forward.1} parent=0 // loop_header_branch
    %34 = sbr.rel (%p32) target = $region8
  $region5: #{autoencoder_forward.1} parent=0 // loop_body
    %s36 = ssub.s32 %s31, 1
    %s37 = ssub.s32 %s31, 2
    %s38 = sadd.s32 %s31, 1
    %s39 = ssub.s32 %s31, %s38
    %p40 = scmp.eq.s32.totalorder %s39, 0
    %s42 = sadd.s32 %s41, 1
    %s43 = scalar_select %p40, %s41, %s42
    %p46 = pneg %p40
    %p47 = scmp.eq.s32.totalorder %s31, 1
    %p48 = por %p46, %p47
    %p49 = scmp.ne.s32.totalorder %s41, %s44
    %p50 = scmp.eq.s32.totalorder %s31, 0
    %p51 = por %p49, %p50
    %p52 = scmp.ne.s32.totalorder %s41, %s44
    %p53 = scmp.eq.s32.totalorder %s36, 1
    %p54 = por %p52, %p53
    %p55 = scmp.ne.s32.totalorder %s44, %s45
    %p56 = scmp.eq.s32.totalorder %s36, 0
    %p57 = por %p55, %p56
    %p58 = scmp.ne.s32.totalorder %s44, %s45
    %p59 = scmp.eq.s32.totalorder %s37, 1
    %p60 = por %p58, %p59
    %p62 = scmp.ne.s32.totalorder %s45, %s61
    %p63 = scmp.eq.s32.totalorder %s37, 0
    %p64 = por %p62, %p63
    %s66 = sadd.s32 %s65, 1
    %p69 = scmp.eq.s32.totalorder %s31, 1
    %p70 = scmp.ne.s32.totalorder %s65, %s67
    %p71 = scmp.eq.s32.totalorder %s31, 0
    %p72 = por %p70, %p71
    %p73 = scmp.ne.s32.totalorder %s65, %s67
    %p74 = scmp.eq.s32.totalorder %s36, 1
    %p75 = por %p73, %p74
    %p76 = scmp.ne.s32.totalorder %s67, %s68
    %p77 = scmp.eq.s32.totalorder %s36, 0
    %p78 = por %p76, %p77
    %p79 = scmp.ne.s32.totalorder %s67, %s68
    %p80 = scmp.eq.s32.totalorder %s37, 1
    %p81 = por %p79, %p80
    %p83 = scmp.ne.s32.totalorder %s68, %s82
    %p84 = scmp.eq.s32.totalorder %s37, 0
    %p85 = por %p83, %p84
    %s87 = sadd.s32 %s86, 1
    %p90 = scmp.eq.s32.totalorder %s31, 1
    %p91 = scmp.ne.s32.totalorder %s86, %s88
    %p92 = scmp.eq.s32.totalorder %s31, 0
    %p93 = por %p91, %p92
    %p94 = scmp.ne.s32.totalorder %s86, %s88
    %p95 = scmp.eq.s32.totalorder %s36, 1
    %p96 = por %p94, %p95
    %p97 = scmp.ne.s32.totalorder %s88, %s89
    %p98 = scmp.eq.s32.totalorder %s36, 0
    %p99 = por %p97, %p98
    %p100 = scmp.ne.s32.totalorder %s88, %s89
    %p101 = scmp.eq.s32.totalorder %s37, 1
    %p102 = por %p100, %p101
    %p104 = scmp.ne.s32.totalorder %s89, %s103
    %p105 = scmp.eq.s32.totalorder %s37, 0
    %p106 = por %p104, %p105
    %s108 = sadd.s32 %s107, 1
    %p111 = scmp.eq.s32.totalorder %s31, 1
    %p112 = scmp.ne.s32.totalorder %s107, %s109
    %p113 = scmp.eq.s32.totalorder %s31, 0
    %p114 = por %p112, %p113
    %p115 = scmp.ne.s32.totalorder %s107, %s109
    %p116 = scmp.eq.s32.totalorder %s36, 1
    %p117 = por %p115, %p116
    %p118 = scmp.ne.s32.totalorder %s109, %s110
    %p119 = scmp.eq.s32.totalorder %s36, 0
    %p120 = por %p118, %p119
    %p121 = scmp.ne.s32.totalorder %s109, %s110
    %p122 = scmp.eq.s32.totalorder %s37, 1
    %p123 = por %p121, %p122
    %p125 = scmp.ne.s32.totalorder %s110, %s124
    %p126 = scmp.eq.s32.totalorder %s37, 0
    %p127 = por %p125, %p126
    %s129 = sadd.s32 %s128, 1
    %p132 = scmp.eq.s32.totalorder %s31, 1
    %p133 = scmp.ne.s32.totalorder %s128, %s130
    %p134 = scmp.eq.s32.totalorder %s31, 0
    %p135 = por %p133, %p134
    %p136 = scmp.ne.s32.totalorder %s128, %s130
    %p137 = scmp.eq.s32.totalorder %s36, 1
    %p138 = por %p136, %p137
    %p139 = scmp.ne.s32.totalorder %s130, %s131
    %p140 = scmp.eq.s32.totalorder %s36, 0
    %p141 = por %p139, %p140
    %p142 = scmp.ne.s32.totalorder %s130, %s131
    %p143 = scmp.eq.s32.totalorder %s37, 1
    %p144 = por %p142, %p143
    %p146 = scmp.ne.s32.totalorder %s131, %s145
    %p147 = scmp.eq.s32.totalorder %s37, 0
    %p148 = por %p146, %p147
    %s150 = sadd.s32 %s149, 1
    %p153 = scmp.eq.s32.totalorder %s31, 1
    %p154 = scmp.ne.s32.totalorder %s149, %s151
    %p155 = scmp.eq.s32.totalorder %s31, 0
    %p156 = por %p154, %p155
    %p157 = scmp.ne.s32.totalorder %s149, %s151
    %p158 = scmp.eq.s32.totalorder %s36, 1
    %p159 = por %p157, %p158
    %p160 = scmp.ne.s32.totalorder %s151, %s152
    %p161 = scmp.eq.s32.totalorder %s36, 0
    %p162 = por %p160, %p161
    %p163 = scmp.ne.s32.totalorder %s151, %s152
    %p164 = scmp.eq.s32.totalorder %s37, 1
    %p165 = por %p163, %p164
    %p167 = scmp.ne.s32.totalorder %s152, %s166
    %p168 = scmp.eq.s32.totalorder %s37, 0
    %p169 = por %p167, %p168
    %s171 = sadd.s32 %s170, 1
    %p174 = scmp.eq.s32.totalorder %s31, 1
    %p175 = scmp.ne.s32.totalorder %s170, %s172
    %p176 = scmp.eq.s32.totalorder %s31, 0
    %p177 = por %p175, %p176
    %p178 = scmp.ne.s32.totalorder %s170, %s172
    %p179 = scmp.eq.s32.totalorder %s36, 1
    %p180 = por %p178, %p179
    %p181 = scmp.ne.s32.totalorder %s172, %s173
    %p182 = scmp.eq.s32.totalorder %s36, 0
    %p183 = por %p181, %p182
    %p184 = scmp.ne.s32.totalorder %s172, %s173
    %p185 = scmp.eq.s32.totalorder %s37, 1
    %p186 = por %p184, %p185
    %p188 = scmp.ne.s32.totalorder %s173, %s187
    %p189 = scmp.eq.s32.totalorder %s37, 0
    %p190 = por %p188, %p189
    %s192 = sadd.s32 %s191, 1
    %p195 = scmp.eq.s32.totalorder %s31, 1
    %p196 = scmp.ne.s32.totalorder %s191, %s193
    %p197 = scmp.eq.s32.totalorder %s31, 0
    %p198 = por %p196, %p197
    %p199 = scmp.ne.s32.totalorder %s191, %s193
    %p200 = scmp.eq.s32.totalorder %s36, 1
    %p201 = por %p199, %p200
    %p202 = scmp.ne.s32.totalorder %s193, %s194
    %p203 = scmp.eq.s32.totalorder %s36, 0
    %p204 = por %p202, %p203
    %p205 = scmp.ne.s32.totalorder %s193, %s194
    %p206 = scmp.eq.s32.totalorder %s37, 1
    %p207 = por %p205, %p206
    %p209 = scmp.ne.s32.totalorder %s194, %s208
    %p210 = scmp.eq.s32.totalorder %s37, 0
    %p211 = por %p209, %p210
    %s213 = sadd.s32 %s212, 1
    %p216 = scmp.eq.s32.totalorder %s31, 1
    %p217 = scmp.ne.s32.totalorder %s212, %s214
    %p218 = scmp.eq.s32.totalorder %s31, 0
    %p219 = por %p217, %p218
    %p220 = scmp.ne.s32.totalorder %s212, %s214
    %p221 = scmp.eq.s32.totalorder %s36, 1
    %p222 = por %p220, %p221
    %p223 = scmp.ne.s32.totalorder %s214, %s215
    %p224 = scmp.eq.s32.totalorder %s36, 0
    %p225 = por %p223, %p224
    %p226 = scmp.ne.s32.totalorder %s214, %s215
    %p227 = scmp.eq.s32.totalorder %s37, 1
    %p228 = por %p226, %p227
    %p230 = scmp.ne.s32.totalorder %s215, %s229
    %p231 = scmp.eq.s32.totalorder %s37, 0
    %p232 = por %p230, %p231
    %s234 = sadd.s32 %s233, 1
    %p237 = scmp.eq.s32.totalorder %s31, 1
    %p238 = scmp.ne.s32.totalorder %s233, %s235
    %p239 = scmp.eq.s32.totalorder %s31, 0
    %p240 = por %p238, %p239
    %p241 = scmp.ne.s32.totalorder %s233, %s235
    %p242 = scmp.eq.s32.totalorder %s36, 1
    %p243 = por %p241, %p242
    %p244 = scmp.ne.s32.totalorder %s235, %s236
    %p245 = scmp.eq.s32.totalorder %s36, 0
    %p246 = por %p244, %p245
    %p247 = scmp.ne.s32.totalorder %s235, %s236
    %p248 = scmp.eq.s32.totalorder %s37, 1
    %p249 = por %p247, %p248
    %p251 = scmp.ne.s32.totalorder %s236, %s250
    %p252 = scmp.eq.s32.totalorder %s37, 0
    %p253 = por %p251, %p252
    %s255 = sadd.s32 %s254, 1
    %p258 = scmp.eq.s32.totalorder %s31, 1
    %p259 = scmp.ne.s32.totalorder %s254, %s256
    %p260 = scmp.eq.s32.totalorder %s31, 0
    %p261 = por %p259, %p260
    %p262 = scmp.ne.s32.totalorder %s254, %s256
    %p263 = scmp.eq.s32.totalorder %s36, 1
    %p264 = por %p262, %p263
    %p265 = scmp.ne.s32.totalorder %s256, %s257
    %p266 = scmp.eq.s32.totalorder %s36, 0
    %p267 = por %p265, %p266
    %p268 = scmp.ne.s32.totalorder %s256, %s257
    %p269 = scmp.eq.s32.totalorder %s37, 1
    %p270 = por %p268, %p269
    %p272 = scmp.ne.s32.totalorder %s257, %s271
    %p273 = scmp.eq.s32.totalorder %s37, 0
    %p274 = por %p272, %p273
    %s276 = sadd.s32 %s275, 1
    %p279 = scmp.eq.s32.totalorder %s31, 1
    %p280 = scmp.ne.s32.totalorder %s275, %s277
    %p281 = scmp.eq.s32.totalorder %s31, 0
    %p282 = por %p280, %p281
    %p283 = scmp.ne.s32.totalorder %s275, %s277
    %p284 = scmp.eq.s32.totalorder %s36, 1
    %p285 = por %p283, %p284
    %p286 = scmp.ne.s32.totalorder %s277, %s278
    %p287 = scmp.eq.s32.totalorder %s36, 0
    %p288 = por %p286, %p287
    %p289 = scmp.ne.s32.totalorder %s277, %s278
    %p290 = scmp.eq.s32.totalorder %s37, 1
    %p291 = por %p289, %p290
    %p293 = scmp.ne.s32.totalorder %s278, %s292
    %p294 = scmp.eq.s32.totalorder %s37, 0
    %p295 = por %p293, %p294
    %s297 = sadd.s32 %s296, 1
    %p300 = scmp.eq.s32.totalorder %s31, 1
    %p301 = scmp.ne.s32.totalorder %s296, %s298
    %p302 = scmp.eq.s32.totalorder %s31, 0
    %p303 = por %p301, %p302
    %p304 = scmp.ne.s32.totalorder %s296, %s298
    %p305 = scmp.eq.s32.totalorder %s36, 1
    %p306 = por %p304, %p305
    %p307 = scmp.ne.s32.totalorder %s298, %s299
    %p308 = scmp.eq.s32.totalorder %s36, 0
    %p309 = por %p307, %p308
    %p310 = scmp.ne.s32.totalorder %s298, %s299
    %p311 = scmp.eq.s32.totalorder %s37, 1
    %p312 = por %p310, %p311
    %p314 = scmp.ne.s32.totalorder %s299, %s313
    %p315 = scmp.eq.s32.totalorder %s37, 0
    %p316 = por %p314, %p315
    %s318 = sadd.s32 %s317, 1
    %p321 = scmp.eq.s32.totalorder %s31, 1
    %p322 = scmp.ne.s32.totalorder %s317, %s319
    %p323 = scmp.eq.s32.totalorder %s31, 0
    %p324 = por %p322, %p323
    %p325 = scmp.ne.s32.totalorder %s317, %s319
    %p326 = scmp.eq.s32.totalorder %s36, 1
    %p327 = por %p325, %p326
    %p328 = scmp.ne.s32.totalorder %s319, %s320
    %p329 = scmp.eq.s32.totalorder %s36, 0
    %p330 = por %p328, %p329
    %p331 = scmp.ne.s32.totalorder %s319, %s320
    %p332 = scmp.eq.s32.totalorder %s37, 1
    %p333 = por %p331, %p332
    %p335 = scmp.ne.s32.totalorder %s320, %s334
    %p336 = scmp.eq.s32.totalorder %s37, 0
    %p337 = por %p335, %p336
    %s339 = sadd.s32 %s338, 1
    %p342 = scmp.eq.s32.totalorder %s31, 1
    %p343 = scmp.ne.s32.totalorder %s338, %s340
    %p344 = scmp.eq.s32.totalorder %s31, 0
    %p345 = por %p343, %p344
    %p346 = scmp.ne.s32.totalorder %s338, %s340
    %p347 = scmp.eq.s32.totalorder %s36, 1
    %p348 = por %p346, %p347
    %p349 = scmp.ne.s32.totalorder %s340, %s341
    %p350 = scmp.eq.s32.totalorder %s36, 0
    %p351 = por %p349, %p350
    %p352 = scmp.ne.s32.totalorder %s340, %s341
    %p353 = scmp.eq.s32.totalorder %s37, 1
    %p354 = por %p352, %p353
    %p356 = scmp.ne.s32.totalorder %s341, %s355
    %p357 = scmp.eq.s32.totalorder %s37, 0
    %p358 = por %p356, %p357
    %s360 = sadd.s32 %s359, 1
    %p363 = scmp.eq.s32.totalorder %s31, 1
    %p364 = scmp.ne.s32.totalorder %s359, %s361
    %p365 = scmp.eq.s32.totalorder %s31, 0
    %p366 = por %p364, %p365
    %p367 = scmp.ne.s32.totalorder %s359, %s361
    %p368 = scmp.eq.s32.totalorder %s36, 1
    %p369 = por %p367, %p368
    %p370 = scmp.ne.s32.totalorder %s361, %s362
    %p371 = scmp.eq.s32.totalorder %s36, 0
    %p372 = por %p370, %p371
    %p373 = scmp.ne.s32.totalorder %s361, %s362
    %p374 = scmp.eq.s32.totalorder %s37, 1
    %p375 = por %p373, %p374
    %p377 = scmp.ne.s32.totalorder %s362, %s376
    %p378 = scmp.eq.s32.totalorder %s37, 0
    %p379 = por %p377, %p378
    %s381 = sadd.s32 %s380, 1
    %p384 = scmp.eq.s32.totalorder %s31, 1
    %p385 = scmp.ne.s32.totalorder %s380, %s382
    %p386 = scmp.eq.s32.totalorder %s31, 0
    %p387 = por %p385, %p386
    %p388 = scmp.ne.s32.totalorder %s380, %s382
    %p389 = scmp.eq.s32.totalorder %s36, 1
    %p390 = por %p388, %p389
    %p391 = scmp.ne.s32.totalorder %s382, %s383
    %p392 = scmp.eq.s32.totalorder %s36, 0
    %p393 = por %p391, %p392
    %p394 = scmp.ne.s32.totalorder %s382, %s383
    %p395 = scmp.eq.s32.totalorder %s37, 1
    %p396 = por %p394, %p395
    %p398 = scmp.ne.s32.totalorder %s383, %s397
    %p399 = scmp.eq.s32.totalorder %s37, 0
    %p400 = por %p398, %p399
    %s402 = sadd.s32 %s401, 1
    %p405 = scmp.eq.s32.totalorder %s31, 1
    %p406 = scmp.ne.s32.totalorder %s401, %s403
    %p407 = scmp.eq.s32.totalorder %s31, 0
    %p408 = por %p406, %p407
    %p409 = scmp.ne.s32.totalorder %s401, %s403
    %p410 = scmp.eq.s32.totalorder %s36, 1
    %p411 = por %p409, %p410
    %p412 = scmp.ne.s32.totalorder %s403, %s404
    %p413 = scmp.eq.s32.totalorder %s36, 0
    %p414 = por %p412, %p413
    %p415 = scmp.ne.s32.totalorder %s403, %s404
    %p416 = scmp.eq.s32.totalorder %s37, 1
    %p417 = por %p415, %p416
    %p419 = scmp.ne.s32.totalorder %s404, %s418
    %p420 = scmp.eq.s32.totalorder %s37, 0
    %p421 = por %p419, %p420
    %s423 = sadd.s32 %s422, 1
    %p426 = scmp.eq.s32.totalorder %s31, 1
    %p427 = scmp.ne.s32.totalorder %s422, %s424
    %p428 = scmp.eq.s32.totalorder %s31, 0
    %p429 = por %p427, %p428
    %p430 = scmp.ne.s32.totalorder %s422, %s424
    %p431 = scmp.eq.s32.totalorder %s36, 1
    %p432 = por %p430, %p431
    %p433 = scmp.ne.s32.totalorder %s424, %s425
    %p434 = scmp.eq.s32.totalorder %s36, 0
    %p435 = por %p433, %p434
    %p436 = scmp.ne.s32.totalorder %s424, %s425
    %p437 = scmp.eq.s32.totalorder %s37, 1
    %p438 = por %p436, %p437
    %p440 = scmp.ne.s32.totalorder %s425, %s439
    %p441 = scmp.eq.s32.totalorder %s37, 0
    %p442 = por %p440, %p441
    %s444 = sadd.s32 %s443, 1
    %p447 = scmp.eq.s32.totalorder %s31, 1
    %p448 = scmp.ne.s32.totalorder %s443, %s445
    %p449 = scmp.eq.s32.totalorder %s31, 0
    %p450 = por %p448, %p449
    %p451 = scmp.ne.s32.totalorder %s443, %s445
    %p452 = scmp.eq.s32.totalorder %s36, 1
    %p453 = por %p451, %p452
    %p454 = scmp.ne.s32.totalorder %s445, %s446
    %p455 = scmp.eq.s32.totalorder %s36, 0
    %p456 = por %p454, %p455
    %p457 = scmp.ne.s32.totalorder %s445, %s446
    %p458 = scmp.eq.s32.totalorder %s37, 1
    %p459 = por %p457, %p458
    %p461 = scmp.ne.s32.totalorder %s446, %s460
    %p462 = scmp.eq.s32.totalorder %s37, 0
    %p463 = por %p461, %p462
    %s465 = sadd.s32 %s464, 1
    %p468 = scmp.eq.s32.totalorder %s31, 1
    %p469 = scmp.ne.s32.totalorder %s464, %s466
    %p470 = scmp.eq.s32.totalorder %s31, 0
    %p471 = por %p469, %p470
    %p472 = scmp.ne.s32.totalorder %s464, %s466
    %p473 = scmp.eq.s32.totalorder %s36, 1
    %p474 = por %p472, %p473
    %p475 = scmp.ne.s32.totalorder %s466, %s467
    %p476 = scmp.eq.s32.totalorder %s36, 0
    %p477 = por %p475, %p476
    %p478 = scmp.ne.s32.totalorder %s466, %s467
    %p479 = scmp.eq.s32.totalorder %s37, 1
    %p480 = por %p478, %p479
    %p482 = scmp.ne.s32.totalorder %s467, %s481
    %p483 = scmp.eq.s32.totalorder %s37, 0
    %p484 = por %p482, %p483
    %s486 = sadd.s32 %s485, 1
    %p489 = scmp.eq.s32.totalorder %s31, 1
    %p490 = scmp.ne.s32.totalorder %s485, %s487
    %p491 = scmp.eq.s32.totalorder %s31, 0
    %p492 = por %p490, %p491
    %p493 = scmp.ne.s32.totalorder %s485, %s487
    %p494 = scmp.eq.s32.totalorder %s36, 1
    %p495 = por %p493, %p494
    %p496 = scmp.ne.s32.totalorder %s487, %s488
    %p497 = scmp.eq.s32.totalorder %s36, 0
    %p498 = por %p496, %p497
    %p499 = scmp.ne.s32.totalorder %s487, %s488
    %p500 = scmp.eq.s32.totalorder %s37, 1
    %p501 = por %p499, %p500
    %p503 = scmp.ne.s32.totalorder %s488, %s502
    %p504 = scmp.eq.s32.totalorder %s37, 0
    %p505 = por %p503, %p504
    %s507 = sadd.s32 %s506, 1
    %p510 = scmp.eq.s32.totalorder %s31, 1
    %p511 = scmp.ne.s32.totalorder %s506, %s508
    %p512 = scmp.eq.s32.totalorder %s31, 0
    %p513 = por %p511, %p512
    %p514 = scmp.ne.s32.totalorder %s506, %s508
    %p515 = scmp.eq.s32.totalorder %s36, 1
    %p516 = por %p514, %p515
    %p517 = scmp.ne.s32.totalorder %s508, %s509
    %p518 = scmp.eq.s32.totalorder %s36, 0
    %p519 = por %p517, %p518
    %p520 = scmp.ne.s32.totalorder %s508, %s509
    %p521 = scmp.eq.s32.totalorder %s37, 1
    %p522 = por %p520, %p521
    %p524 = scmp.ne.s32.totalorder %s509, %s523
    %p525 = scmp.eq.s32.totalorder %s37, 0
    %p526 = por %p524, %p525
    %s528 = sadd.s32 %s527, 1
    %p531 = scmp.eq.s32.totalorder %s31, 1
    %p532 = scmp.ne.s32.totalorder %s527, %s529
    %p533 = scmp.eq.s32.totalorder %s31, 0
    %p534 = por %p532, %p533
    %p535 = scmp.ne.s32.totalorder %s527, %s529
    %p536 = scmp.eq.s32.totalorder %s36, 1
    %p537 = por %p535, %p536
    %p538 = scmp.ne.s32.totalorder %s529, %s530
    %p539 = scmp.eq.s32.totalorder %s36, 0
    %p540 = por %p538, %p539
    %p541 = scmp.ne.s32.totalorder %s529, %s530
    %p542 = scmp.eq.s32.totalorder %s37, 1
    %p543 = por %p541, %p542
    %p545 = scmp.ne.s32.totalorder %s530, %s544
    %p546 = scmp.eq.s32.totalorder %s37, 0
    %p547 = por %p545, %p546
    %s549 = sadd.s32 %s548, 1
    %p552 = scmp.eq.s32.totalorder %s31, 1
    %p553 = scmp.ne.s32.totalorder %s548, %s550
    %p554 = scmp.eq.s32.totalorder %s31, 0
    %p555 = por %p553, %p554
    %p556 = scmp.ne.s32.totalorder %s548, %s550
    %p557 = scmp.eq.s32.totalorder %s36, 1
    %p558 = por %p556, %p557
    %p559 = scmp.ne.s32.totalorder %s550, %s551
    %p560 = scmp.eq.s32.totalorder %s36, 0
    %p561 = por %p559, %p560
    %p562 = scmp.ne.s32.totalorder %s550, %s551
    %p563 = scmp.eq.s32.totalorder %s37, 1
    %p564 = por %p562, %p563
    %p566 = scmp.ne.s32.totalorder %s551, %s565
    %p567 = scmp.eq.s32.totalorder %s37, 0
    %p568 = por %p566, %p567
    %s569 = ssub.s32 %s31, %s38
    %p570 = scmp.eq.s32.totalorder %s569, 0
    %s572 = sadd.s32 %s571, 1
    %s573 = scalar_select %p570, %s571, %s572
    %p576 = pneg %p570
    %p577 = scmp.eq.s32.totalorder %s31, 1
    %p578 = por %p576, %p577
    %p579 = scmp.ne.s32.totalorder %s571, %s574
    %p580 = scmp.eq.s32.totalorder %s31, 0
    %p581 = por %p579, %p580
    %p582 = scmp.ne.s32.totalorder %s571, %s574
    %p583 = scmp.eq.s32.totalorder %s36, 1
    %p584 = por %p582, %p583
    %p585 = scmp.ne.s32.totalorder %s574, %s575
    %p586 = scmp.eq.s32.totalorder %s36, 0
    %p587 = por %p585, %p586
    %p588 = scmp.ne.s32.totalorder %s574, %s575
    %p589 = scmp.eq.s32.totalorder %s37, 1
    %p590 = por %p588, %p589
    %p592 = scmp.ne.s32.totalorder %s575, %s591
    %p593 = scmp.eq.s32.totalorder %s37, 0
    %p594 = por %p592, %p593
    %p595 = scmp.le.s32.totalorder 1, %s31
    %p596 = scmp.lt.s32.totalorder %s31, 3
    %p597 = pnand %p595, %p596
    %p598 = pneg %p597
    // Predicated region
    $region9: #{autoencoder_forward.1} parent=5 // pred_check
      _
    $region10: #{autoencoder_forward.1} parent=5 // pred_check_branch
      %600 = sbr.rel (%p597) target = $region12
    $region11: #{autoencoder_forward.1} parent=5 // pred_region
      %s601 = ssub.s32 %s31, 1
      // Predicated region
      $region13: #{autoencoder_forward.1} parent=11 // pred_check
        %p602 = pneg %p78
      $region14: #{autoencoder_forward.1} parent=11 // pred_check_branch
        %604 = sbr.rel (%p602) target = $region16
      $region15: #{autoencoder_forward.1} parent=11 // pred_region
        _
      $region16: #{autoencoder_forward.1} parent=11 // pred_fallthru
        _
      // Predicated region
      $region17: #{autoencoder_forward.1} parent=11 // pred_check
        %p605 = pneg %p99
      $region18: #{autoencoder_forward.1} parent=11 // pred_check_branch
        %607 = sbr.rel (%p605) target = $region20
      $region19: #{autoencoder_forward.1} parent=11 // pred_region
        _
      $region20: #{autoencoder_forward.1} parent=11 // pred_fallthru
        _
      // Predicated region
      $region21: #{autoencoder_forward.1} parent=11 // pred_check
        %p608 = pneg %p120
      $region22: #{autoencoder_forward.1} parent=11 // pred_check_branch
        %610 = sbr.rel (%p608) target = $region24
      $region23: #{autoencoder_forward.1} parent=11 // pred_region
        _
      $region24: #{autoencoder_forward.1} parent=11 // pred_fallthru
        _
      // Predicated region
      $region25: #{autoencoder_forward.1} parent=11 // pred_check
        %p611 = pneg %p141
      $region26: #{autoencoder_forward.1} parent=11 // pred_check_branch
        %613 = sbr.rel (%p611) target = $region28
      $region27: #{autoencoder_forward.1} parent=11 // pred_region
        _
      $region28: #{autoencoder_forward.1} parent=11 // pred_fallthru
        _
      // Predicated region
      $region29: #{autoencoder_forward.1} parent=11 // pred_check
        %p614 = pneg %p162
      $region30: #{autoencoder_forward.1} parent=11 // pred_check_branch
        %616 = sbr.rel (%p614) target = $region32
      $region31: #{autoencoder_forward.1} parent=11 // pred_region
        _
      $region32: #{autoencoder_forward.1} parent=11 // pred_fallthru
        _
      // Predicated region
      $region33: #{autoencoder_forward.1} parent=11 // pred_check
        %p617 = pneg %p183
      $region34: #{autoencoder_forward.1} parent=11 // pred_check_branch
        %619 = sbr.rel (%p617) target = $region36
      $region35: #{autoencoder_forward.1} parent=11 // pred_region
        _
      $region36: #{autoencoder_forward.1} parent=11 // pred_fallthru
        _
      // Predicated region
      $region37: #{autoencoder_forward.1} parent=11 // pred_check
        %p620 = pneg %p204
      $region38: #{autoencoder_forward.1} parent=11 // pred_check_branch
        %622 = sbr.rel (%p620) target = $region40
      $region39: #{autoencoder_forward.1} parent=11 // pred_region
        _
      $region40: #{autoencoder_forward.1} parent=11 // pred_fallthru
        _
      // Predicated region
      $region41: #{autoencoder_forward.1} parent=11 // pred_check
        %p623 = pneg %p225
      $region42: #{autoencoder_forward.1} parent=11 // pred_check_branch
        %625 = sbr.rel (%p623) target = $region44
      $region43: #{autoencoder_forward.1} parent=11 // pred_region
        _
      $region44: #{autoencoder_forward.1} parent=11 // pred_fallthru
        _
      // Predicated region
      $region45: #{autoencoder_forward.1} parent=11 // pred_check
        %p626 = pneg %p246
      $region46: #{autoencoder_forward.1} parent=11 // pred_check_branch
        %628 = sbr.rel (%p626) target = $region48
      $region47: #{autoencoder_forward.1} parent=11 // pred_region
        _
      $region48: #{autoencoder_forward.1} parent=11 // pred_fallthru
        _
      // Predicated region
      $region49: #{autoencoder_forward.1} parent=11 // pred_check
        %p629 = pneg %p267
      $region50: #{autoencoder_forward.1} parent=11 // pred_check_branch
        %631 = sbr.rel (%p629) target = $region52
      $region51: #{autoencoder_forward.1} parent=11 // pred_region
        _
      $region52: #{autoencoder_forward.1} parent=11 // pred_fallthru
        _
      // Predicated region
      $region53: #{autoencoder_forward.1} parent=11 // pred_check
        %p632 = pneg %p288
      $region54: #{autoencoder_forward.1} parent=11 // pred_check_branch
        %634 = sbr.rel (%p632) target = $region56
      $region55: #{autoencoder_forward.1} parent=11 // pred_region
        _
      $region56: #{autoencoder_forward.1} parent=11 // pred_fallthru
        _
      // Predicated region
      $region57: #{autoencoder_forward.1} parent=11 // pred_check
        %p635 = pneg %p309
      $region58: #{autoencoder_forward.1} parent=11 // pred_check_branch
        %637 = sbr.rel (%p635) target = $region60
      $region59: #{autoencoder_forward.1} parent=11 // pred_region
        _
      $region60: #{autoencoder_forward.1} parent=11 // pred_fallthru
        _
      // Predicated region
      $region61: #{autoencoder_forward.1} parent=11 // pred_check
        %p638 = pneg %p330
      $region62: #{autoencoder_forward.1} parent=11 // pred_check_branch
        %640 = sbr.rel (%p638) target = $region64
      $region63: #{autoencoder_forward.1} parent=11 // pred_region
        _
      $region64: #{autoencoder_forward.1} parent=11 // pred_fallthru
        _
      // Predicated region
      $region65: #{autoencoder_forward.1} parent=11 // pred_check
        %p641 = pneg %p351
      $region66: #{autoencoder_forward.1} parent=11 // pred_check_branch
        %643 = sbr.rel (%p641) target = $region68
      $region67: #{autoencoder_forward.1} parent=11 // pred_region
        _
      $region68: #{autoencoder_forward.1} parent=11 // pred_fallthru
        _
      // Predicated region
      $region69: #{autoencoder_forward.1} parent=11 // pred_check
        %p644 = pneg %p372
      $region70: #{autoencoder_forward.1} parent=11 // pred_check_branch
        %646 = sbr.rel (%p644) target = $region72
      $region71: #{autoencoder_forward.1} parent=11 // pred_region
        _
      $region72: #{autoencoder_forward.1} parent=11 // pred_fallthru
        _
      // Predicated region
      $region73: #{autoencoder_forward.1} parent=11 // pred_check
        %p647 = pneg %p393
      $region74: #{autoencoder_forward.1} parent=11 // pred_check_branch
        %649 = sbr.rel (%p647) target = $region76
      $region75: #{autoencoder_forward.1} parent=11 // pred_region
        _
      $region76: #{autoencoder_forward.1} parent=11 // pred_fallthru
        _
      // Predicated region
      $region77: #{autoencoder_forward.1} parent=11 // pred_check
        %p650 = pneg %p414
      $region78: #{autoencoder_forward.1} parent=11 // pred_check_branch
        %652 = sbr.rel (%p650) target = $region80
      $region79: #{autoencoder_forward.1} parent=11 // pred_region
        _
      $region80: #{autoencoder_forward.1} parent=11 // pred_fallthru
        _
      // Predicated region
      $region81: #{autoencoder_forward.1} parent=11 // pred_check
        %p653 = pneg %p435
      $region82: #{autoencoder_forward.1} parent=11 // pred_check_branch
        %655 = sbr.rel (%p653) target = $region84
      $region83: #{autoencoder_forward.1} parent=11 // pred_region
        _
      $region84: #{autoencoder_forward.1} parent=11 // pred_fallthru
        _
      // Predicated region
      $region85: #{autoencoder_forward.1} parent=11 // pred_check
        %p656 = pneg %p456
      $region86: #{autoencoder_forward.1} parent=11 // pred_check_branch
        %658 = sbr.rel (%p656) target = $region88
      $region87: #{autoencoder_forward.1} parent=11 // pred_region
        _
      $region88: #{autoencoder_forward.1} parent=11 // pred_fallthru
        _
      // Predicated region
      $region89: #{autoencoder_forward.1} parent=11 // pred_check
        %p659 = pneg %p477
      $region90: #{autoencoder_forward.1} parent=11 // pred_check_branch
        %661 = sbr.rel (%p659) target = $region92
      $region91: #{autoencoder_forward.1} parent=11 // pred_region
        _
      $region92: #{autoencoder_forward.1} parent=11 // pred_fallthru
        _
      // Predicated region
      $region93: #{autoencoder_forward.1} parent=11 // pred_check
        %p662 = pneg %p498
      $region94: #{autoencoder_forward.1} parent=11 // pred_check_branch
        %664 = sbr.rel (%p662) target = $region96
      $region95: #{autoencoder_forward.1} parent=11 // pred_region
        _
      $region96: #{autoencoder_forward.1} parent=11 // pred_fallthru
        _
      // Predicated region
      $region97: #{autoencoder_forward.1} parent=11 // pred_check
        %p665 = pneg %p519
      $region98: #{autoencoder_forward.1} parent=11 // pred_check_branch
        %667 = sbr.rel (%p665) target = $region100
      $region99: #{autoencoder_forward.1} parent=11 // pred_region
        _
      $region100: #{autoencoder_forward.1} parent=11 // pred_fallthru
        _
      // Predicated region
      $region101: #{autoencoder_forward.1} parent=11 // pred_check
        %p668 = pneg %p540
      $region102: #{autoencoder_forward.1} parent=11 // pred_check_branch
        %670 = sbr.rel (%p668) target = $region104
      $region103: #{autoencoder_forward.1} parent=11 // pred_region
        _
      $region104: #{autoencoder_forward.1} parent=11 // pred_fallthru
        _
      // Predicated region
      $region105: #{autoencoder_forward.1} parent=11 // pred_check
        %p671 = pneg %p561
      $region106: #{autoencoder_forward.1} parent=11 // pred_check_branch
        %673 = sbr.rel (%p671) target = $region108
      $region107: #{autoencoder_forward.1} parent=11 // pred_region
        _
      $region108: #{autoencoder_forward.1} parent=11 // pred_fallthru
        _
    $region12: #{autoencoder_forward.1} parent=5 // pred_fallthru
      _
    %p674 = scmp.lt.s32.totalorder %s31, 2
    // Predicated region
    $region109: #{autoencoder_forward.1} parent=5 // pred_check
      %p675 = pneg %p674
    $region110: #{autoencoder_forward.1} parent=5 // pred_check_branch
      %677 = sbr.rel (%p675) target = $region112
    $region111: #{autoencoder_forward.1} parent=5 // pred_region
      // Predicated region
      $region113: #{autoencoder_forward.1} parent=111 // pred_check
        %p678 = pneg %p51
      $region114: #{autoencoder_forward.1} parent=111 // pred_check_branch
        %680 = sbr.rel (%p678) target = $region116
      $region115: #{autoencoder_forward.1} parent=111 // pred_region
        %s681 = smul.u32 4, %s31
        %p682 = scmp.lt.s32.totalorder %s681, 7
        %s683 = scalar_select %p682, %s681, 7
        %s684 = smul.addr %s683, 8
        %s685 = scalar_lea.vmem %s0, %s684
        %s686 = smul.u32 4, %s31
      $region116: #{autoencoder_forward.1} parent=111 // pred_fallthru
        _
    $region112: #{autoencoder_forward.1} parent=5 // pred_fallthru
      _
    %p687 = scmp.le.s32.totalorder 1, %s31
    %p688 = scmp.lt.s32.totalorder %s31, 3
    %p689 = pnand %p687, %p688
    %p690 = pneg %p689
    // Predicated region
    $region117: #{autoencoder_forward.1} parent=5 // pred_check
      _
    $region118: #{autoencoder_forward.1} parent=5 // pred_check_branch
      %692 = sbr.rel (%p689) target = $region120
    $region119: #{autoencoder_forward.1} parent=5 // pred_region
      %s693 = ssub.s32 %s31, 1
      %s694 = smul.u32 4, %s36
      %p695 = scmp.lt.s32.totalorder %s694, 7
      %s696 = scalar_select %p695, %s694, 7
      %s697 = smul.addr %s696, 8
      %s698 = scalar_lea.vmem %s0, %s697
      %p699 = pneg %p57
      %p700 = pneg %p54
      %p701 = pneg %p78
      %p702 = pneg %p75
      %p703 = pneg %p99
      %p704 = pneg %p96
      %p705 = pneg %p120
      %p706 = pneg %p117
      %p707 = pneg %p141
      %p708 = pneg %p138
      %p709 = pneg %p162
      %p710 = pneg %p159
      %p711 = pneg %p183
      %p712 = pneg %p180
      %p713 = pneg %p204
      %p714 = pneg %p201
      %p715 = pneg %p225
      %p716 = pneg %p222
      %p717 = pneg %p246
      %p718 = pneg %p243
      %p719 = pneg %p267
      %p720 = pneg %p264
      %p721 = pneg %p288
      %p722 = pneg %p285
      %p723 = pneg %p309
      %p724 = pneg %p306
      %p725 = pneg %p330
      %p726 = pneg %p327
      %p727 = pneg %p351
      %p728 = pneg %p348
      %p729 = pneg %p372
      %p730 = pneg %p369
      %p731 = pneg %p393
      %p732 = pneg %p390
      %p733 = pneg %p414
      %p734 = pneg %p411
      %p735 = pneg %p435
      %p736 = pneg %p432
      %p737 = pneg %p456
      %p738 = pneg %p453
      %p739 = pneg %p477
      %p740 = pneg %p474
      %p741 = pneg %p498
      %p742 = pneg %p495
      %p743 = pneg %p519
      %p744 = pneg %p516
      %p745 = pneg %p540
      %p746 = pneg %p537
      %p747 = pneg %p561
      %p748 = pneg %p558
      %p749 = pneg %p587
      %p750 = pneg %p584
      %s751 = smul.u32 4, %s36
      %p752 = scmp.lt.s32.totalorder %s751, 7
      %s753 = scalar_select %p752, %s751, 7
      %s754 = smul.addr %s753, 3
      %s755 = smul.addr %s754, 8
      %s756 = scalar_lea.vmem %s25, %s755
      %s757 = smul.u32 4, %s36
      %p758 = scmp.lt.s32.totalorder %s757, 7
      %s759 = scalar_select %p758, %s757, 7
      %s760 = smul.addr %s759, 8
      %s761 = scalar_lea.vmem %s0, %s760
      %s762 = smul.u32 4, %s36
      %s763 = smul.u32 4, %s36
      %p764 = scmp.lt.s32.totalorder %s763, 7
      %s765 = scalar_select %p764, %s763, 7
      %s766 = smul.addr %s765, 3
      %s767 = smul.addr %s766, 8
      %s768 = scalar_lea.vmem %s25, %s767
      %s769 = smul.u32 4, %s36
      %v771 = vld [vmem:[%s761] sm:$0xff]
      %v772 = vld [vmem:[%s761 + $0x8] sm:$0xff]
      %v773 = vld [vmem:[%s761 + $0x10] sm:$0xff]
      %v774 = vld [vmem:[%s761 + $0x18] sm:$0xff]
      %v775 = vpack.c.bf16 %v772, %v771
      %v776 = vpack.c.bf16 %v774, %v773
      %v777 = vld [vmem:[%s1] sm:$0xff]
      %v778 = vld [vmem:[%s1 + $0x8] sm:$0xff]
      %v779 = vld [vmem:[%s1 + $0x10] sm:$0xff]
      %v780 = vld [vmem:[%s1 + $0x18] sm:$0xff]
      %v781 = vld [vmem:[%s1 + $0x20] sm:$0xff]
      %v782 = vld [vmem:[%s1 + $0x28] sm:$0xff]
      %v783 = vld [vmem:[%s1 + $0x30] sm:$0xff]
      %v784 = vld [vmem:[%s1 + $0x38] sm:$0xff]
      %v785 = vld [vmem:[%s1 + $0x40] sm:$0xff]
      %v786 = vld [vmem:[%s1 + $0x48] sm:$0xff]
      %v787 = vld [vmem:[%s1 + $0x50] sm:$0xff]
      %v788 = vld [vmem:[%s1 + $0x58] sm:$0xff]
      %v789 = vld [vmem:[%s1 + $0x60] sm:$0xff]
      %v790 = vld [vmem:[%s1 + $0x68] sm:$0xff]
      %v791 = vld [vmem:[%s1 + $0x70] sm:$0xff]
      %v792 = vld [vmem:[%s1 + $0x78] sm:$0xff]
      %v793 = vld [vmem:[%s2] sm:$0x3]
      %v795 = vlaneseq
      %v796 = vshrl.u32 %v795, 7
      %v797 = vsub.s32 0, %v796
      %v798 = vrot.slane %v793, %v797
      %v799 = vlaneseq
      %v800 = vshrl.u32 %v799, 7
      %v801 = vsub.s32 1, %v800
      %v802 = vrot.slane %v793, %v801
      %v821 = vunpack.c.l.b16 %v777
      %v822 = vunpack.c.h.b16 %v777
      %v823 = vunpack.c.l.b16 %v778
      %v824 = vunpack.c.h.b16 %v778
      %v825 = vunpack.c.l.b16 %v779
      %v826 = vunpack.c.h.b16 %v779
      %v827 = vunpack.c.l.b16 %v780
      %v828 = vunpack.c.h.b16 %v780
      %v829 = vunpack.c.l.b16 %v781
      %v830 = vunpack.c.h.b16 %v781
      %v831 = vunpack.c.l.b16 %v782
      %v832 = vunpack.c.h.b16 %v782
      %v833 = vunpack.c.l.b16 %v783
      %v834 = vunpack.c.h.b16 %v783
      %v835 = vunpack.c.l.b16 %v784
      %v836 = vunpack.c.h.b16 %v784
      %v837 = vunpack.c.l.b16 %v785
      %v838 = vunpack.c.h.b16 %v785
      %v839 = vunpack.c.l.b16 %v786
      %v840 = vunpack.c.h.b16 %v786
      %v841 = vunpack.c.l.b16 %v787
      %v842 = vunpack.c.h.b16 %v787
      %v843 = vunpack.c.l.b16 %v788
      %v844 = vunpack.c.h.b16 %v788
      %v845 = vunpack.c.l.b16 %v789
      %v846 = vunpack.c.h.b16 %v789
      %v847 = vunpack.c.l.b16 %v790
      %v848 = vunpack.c.h.b16 %v790
      %v849 = vunpack.c.l.b16 %v791
      %v850 = vunpack.c.h.b16 %v791
      %v851 = vunpack.c.l.b16 %v792
      %v852 = vunpack.c.h.b16 %v792
      %v853 = vpack.c.b16 %v823, %v821
      %v854 = vpack.c.b16 %v824, %v822
      %v855 = vpack.c.b16 %v827, %v825
      %v856 = vpack.c.b16 %v828, %v826
      %v857 = vpack.c.b16 %v831, %v829
      %v858 = vpack.c.b16 %v832, %v830
      %v859 = vpack.c.b16 %v835, %v833
      %v860 = vpack.c.b16 %v836, %v834
      %v861 = vpack.c.b16 %v839, %v837
      %v862 = vpack.c.b16 %v840, %v838
      %v863 = vpack.c.b16 %v843, %v841
      %v864 = vpack.c.b16 %v844, %v842
      %v865 = vpack.c.b16 %v847, %v845
      %v866 = vpack.c.b16 %v848, %v846
      %v867 = vpack.c.b16 %v851, %v849
      %v868 = vpack.c.b16 %v852, %v850
      %885 = vmatprep.subr.bf16.mxu0 %v854
      %886 = vmatpush1.bf16.msra.mxu0 %v853
      %887 = vmatprep.subr.bf16.mxu0 %v856
      %888 = vmatpush1.bf16.msra.mxu0 %v855
      %889 = vmatprep.subr.bf16.mxu0 %v858
      %890 = vmatpush1.bf16.msra.mxu0 %v857
      %891 = vmatprep.subr.bf16.mxu0 %v860
      %892 = vmatpush1.bf16.msra.mxu0 %v859
      %893 = vmatprep.subr.bf16.mxu0 %v862
      %894 = vmatpush1.bf16.msra.mxu0 %v861
      %895 = vmatprep.subr.bf16.mxu0 %v864
      %896 = vmatpush1.bf16.msra.mxu0 %v863
      %897 = vmatprep.subr.bf16.mxu0 %v866
      %898 = vmatpush1.bf16.msra.mxu0 %v865
      %899 = vmatprep.subr.bf16.mxu0 %v868
      %900 = vmatpush1.bf16.msra.mxu0 %v867
      %901 = vmatprep.subr.bf16.mxu0 0
      %902 = vmatpush1.bf16.msra.mxu0 0
      %903 = vmatprep.subr.bf16.mxu0 0
      %904 = vmatpush1.bf16.msra.mxu0 0
      %905 = vmatprep.subr.bf16.mxu0 0
      %906 = vmatpush1.bf16.msra.mxu0 0
      %907 = vmatprep.subr.bf16.mxu0 0
      %908 = vmatpush1.bf16.msra.mxu0 0
      %909 = vmatprep.subr.bf16.mxu0 0
      %910 = vmatpush1.bf16.msra.mxu0 0
      %911 = vmatprep.subr.bf16.mxu0 0
      %912 = vmatpush1.bf16.msra.mxu0 0
      %913 = vmatprep.subr.bf16.mxu0 0
      %914 = vmatpush1.bf16.msra.mxu0 0
      %915 = vmatprep.subr.bf16.mxu0 0
      %916 = vmatpush1.bf16.msra.mxu0 0
      %917 = vmatprep.mubr.bf16.mxu0 0
      %918 = vmatmul.mubr.bf16.gmra.mrb[0].mxu0 %v775
      %v919 = vpop.f32.mrb[0].mxu0
      %v920 = vadd.f32 %v798, %v919
      %v921 = vpop.f32.mrb[0].mxu0
      %v922 = vadd.f32 %v802, %v921
      %v923 = vpop.f32.mrb[0].mxu0
      %v924 = vadd.f32 %v798, %v923
      %v925 = vpop.f32.mrb[0].mxu0
      %v926 = vadd.f32 %v802, %v925
      %927 = vmatprep.mubr.bf16.mxu0 0
      %928 = vmatmul.mubr.bf16.gmra.mrb[0].mxu0 %v776
      %v929 = vpop.f32.mrb[0].mxu0
      %v930 = vadd.f32 %v798, %v929
      %v931 = vpop.f32.mrb[0].mxu0
      %v932 = vadd.f32 %v802, %v931
      %v933 = vpop.f32.mrb[0].mxu0
      %v934 = vadd.f32 %v798, %v933
      %v935 = vpop.f32.mrb[0].mxu0
      %v936 = vadd.f32 %v802, %v935
      %937 = vdwg.mxu0
      %vm938 = vcmp.gt.f32.partialorder %v920, 0.0
      %vm939 = vcmp.gt.f32.partialorder %v922, 0.0
      %vm940 = vcmp.gt.f32.partialorder %v924, 0.0
      %vm941 = vcmp.gt.f32.partialorder %v926, 0.0
      %vm942 = vcmp.gt.f32.partialorder %v930, 0.0
      %vm943 = vcmp.gt.f32.partialorder %v932, 0.0
      %vm944 = vcmp.gt.f32.partialorder %v934, 0.0
      %vm945 = vcmp.gt.f32.partialorder %v936, 0.0
      %v946 = vmul.f32 %v920, 0.2
      %v947 = vmul.f32 %v922, 0.2
      %v948 = vmul.f32 %v924, 0.2
      %v949 = vmul.f32 %v926, 0.2
      %v950 = vmul.f32 %v930, 0.2
      %v951 = vmul.f32 %v932, 0.2
      %v952 = vmul.f32 %v934, 0.2
      %v953 = vmul.f32 %v936, 0.2
      %v954 = vsel %vm938, %v920, %v946
      %v955 = vsel %vm939, %v922, %v947
      %v956 = vsel %vm940, %v924, %v948
      %v957 = vsel %vm941, %v926, %v949
      %v958 = vsel %vm942, %v930, %v950
      %v959 = vsel %vm943, %v932, %v951
      %v960 = vsel %vm944, %v934, %v952
      %v961 = vsel %vm945, %v936, %v953
      %v962 = vpack.c.bf16 %v956, %v954
      %v963 = vpack.c.bf16 %v957, %v955
      %v964 = vpack.c.bf16 %v960, %v958
      %v965 = vpack.c.bf16 %v961, %v959
      %v966 = vld [vmem:[%s3] sm:$0xf]
      %v967 = vld [vmem:[%s3 + $0x4] sm:$0xf]
      %v968 = vld [vmem:[%s3 + $0x8] sm:$0xf]
      %v969 = vld [vmem:[%s3 + $0xc] sm:$0xf]
      %v970 = vld [vmem:[%s3 + $0x10] sm:$0xf]
      %v971 = vld [vmem:[%s3 + $0x14] sm:$0xf]
      %v972 = vld [vmem:[%s3 + $0x18] sm:$0xf]
      %v973 = vld [vmem:[%s3 + $0x1c] sm:$0xf]
      %v974 = vld [vmem:[%s3 + $0x20] sm:$0xf]
      %v975 = vld [vmem:[%s3 + $0x24] sm:$0xf]
      %v976 = vld [vmem:[%s3 + $0x28] sm:$0xf]
      %v977 = vld [vmem:[%s3 + $0x2c] sm:$0xf]
      %v978 = vld [vmem:[%s3 + $0x30] sm:$0xf]
      %v979 = vld [vmem:[%s3 + $0x34] sm:$0xf]
      %v980 = vld [vmem:[%s3 + $0x38] sm:$0xf]
      %v981 = vld [vmem:[%s3 + $0x3c] sm:$0xf]
      %v982 = vld [vmem:[%s3 + $0x40] sm:$0xf]
      %v983 = vld [vmem:[%s3 + $0x44] sm:$0xf]
      %v984 = vld [vmem:[%s3 + $0x48] sm:$0xf]
      %v985 = vld [vmem:[%s3 + $0x4c] sm:$0xf]
      %v986 = vld [vmem:[%s3 + $0x50] sm:$0xf]
      %v987 = vld [vmem:[%s3 + $0x54] sm:$0xf]
      %v988 = vld [vmem:[%s3 + $0x58] sm:$0xf]
      %v989 = vld [vmem:[%s3 + $0x5c] sm:$0xf]
      %v990 = vld [vmem:[%s3 + $0x60] sm:$0xf]
      %v991 = vld [vmem:[%s3 + $0x64] sm:$0xf]
      %v992 = vld [vmem:[%s3 + $0x68] sm:$0xf]
      %v993 = vld [vmem:[%s3 + $0x6c] sm:$0xf]
      %v994 = vld [vmem:[%s3 + $0x70] sm:$0xf]
      %v995 = vld [vmem:[%s3 + $0x74] sm:$0xf]
      %v996 = vld [vmem:[%s3 + $0x78] sm:$0xf]
      %v997 = vld [vmem:[%s3 + $0x7c] sm:$0xf]
      %v998 = vld [vmem:[%s4] sm:$0x1]
      %v1000 = vlaneseq
      %v1001 = vshrl.u32 %v1000, 7
      %v1002 = vsub.s32 0, %v1001
      %v1003 = vrot.slane %v998, %v1002
      %v1037 = vunpack.c.l.b16 %v966
      %v1038 = vunpack.c.l.b16 %v967
      %v1039 = vunpack.c.l.b16 %v968
      %v1040 = vunpack.c.l.b16 %v969
      %v1041 = vunpack.c.l.b16 %v970
      %v1042 = vunpack.c.l.b16 %v971
      %v1043 = vunpack.c.l.b16 %v972
      %v1044 = vunpack.c.l.b16 %v973
      %v1045 = vunpack.c.l.b16 %v974
      %v1046 = vunpack.c.l.b16 %v975
      %v1047 = vunpack.c.l.b16 %v976
      %v1048 = vunpack.c.l.b16 %v977
      %v1049 = vunpack.c.l.b16 %v978
      %v1050 = vunpack.c.l.b16 %v979
      %v1051 = vunpack.c.l.b16 %v980
      %v1052 = vunpack.c.l.b16 %v981
      %v1053 = vunpack.c.l.b16 %v982
      %v1054 = vunpack.c.l.b16 %v983
      %v1055 = vunpack.c.l.b16 %v984
      %v1056 = vunpack.c.l.b16 %v985
      %v1057 = vunpack.c.l.b16 %v986
      %v1058 = vunpack.c.l.b16 %v987
      %v1059 = vunpack.c.l.b16 %v988
      %v1060 = vunpack.c.l.b16 %v989
      %v1061 = vunpack.c.l.b16 %v990
      %v1062 = vunpack.c.l.b16 %v991
      %v1063 = vunpack.c.l.b16 %v992
      %v1064 = vunpack.c.l.b16 %v993
      %v1065 = vunpack.c.l.b16 %v994
      %v1066 = vunpack.c.l.b16 %v995
      %v1067 = vunpack.c.l.b16 %v996
      %v1068 = vunpack.c.l.b16 %v997
      %v1069 = vpack.c.b16 %v1038, %v1037
      %v1070 = vpack.c.b16 %v1040, %v1039
      %v1071 = vpack.c.b16 %v1042, %v1041
      %v1072 = vpack.c.b16 %v1044, %v1043
      %v1073 = vpack.c.b16 %v1046, %v1045
      %v1074 = vpack.c.b16 %v1048, %v1047
      %v1075 = vpack.c.b16 %v1050, %v1049
      %v1076 = vpack.c.b16 %v1052, %v1051
      %v1077 = vpack.c.b16 %v1054, %v1053
      %v1078 = vpack.c.b16 %v1056, %v1055
      %v1079 = vpack.c.b16 %v1058, %v1057
      %v1080 = vpack.c.b16 %v1060, %v1059
      %v1081 = vpack.c.b16 %v1062, %v1061
      %v1082 = vpack.c.b16 %v1064, %v1063
      %v1083 = vpack.c.b16 %v1066, %v1065
      %v1084 = vpack.c.b16 %v1068, %v1067
      %1101 = vmatprep.subr.bf16.mxu0 0
      %1102 = vmatpush1.bf16.msra.mxu0 %v1069
      %1103 = vmatprep.subr.bf16.mxu0 0
      %1104 = vmatpush1.bf16.msra.mxu0 %v1070
      %1105 = vmatprep.subr.bf16.mxu0 0
      %1106 = vmatpush1.bf16.msra.mxu0 %v1071
      %1107 = vmatprep.subr.bf16.mxu0 0
      %1108 = vmatpush1.bf16.msra.mxu0 %v1072
      %1109 = vmatprep.subr.bf16.mxu0 0
      %1110 = vmatpush1.bf16.msra.mxu0 %v1073
      %1111 = vmatprep.subr.bf16.mxu0 0
      %1112 = vmatpush1.bf16.msra.mxu0 %v1074
      %1113 = vmatprep.subr.bf16.mxu0 0
      %1114 = vmatpush1.bf16.msra.mxu0 %v1075
      %1115 = vmatprep.subr.bf16.mxu0 0
      %1116 = vmatpush1.bf16.msra.mxu0 %v1076
      %1117 = vmatprep.subr.bf16.mxu0 0
      %1118 = vmatpush1.bf16.msra.mxu0 %v1077
      %1119 = vmatprep.subr.bf16.mxu0 0
      %1120 = vmatpush1.bf16.msra.mxu0 %v1078
      %1121 = vmatprep.subr.bf16.mxu0 0
      %1122 = vmatpush1.bf16.msra.mxu0 %v1079
      %1123 = vmatprep.subr.bf16.mxu0 0
      %1124 = vmatpush1.bf16.msra.mxu0 %v1080
      %1125 = vmatprep.subr.bf16.mxu0 0
      %1126 = vmatpush1.bf16.msra.mxu0 %v1081
      %1127 = vmatprep.subr.bf16.mxu0 0
      %1128 = vmatpush1.bf16.msra.mxu0 %v1082
      %1129 = vmatprep.subr.bf16.mxu0 0
      %1130 = vmatpush1.bf16.msra.mxu0 %v1083
      %1131 = vmatprep.subr.bf16.mxu0 0
      %1132 = vmatpush1.bf16.msra.mxu0 %v1084
      %1133 = vmatprep.mubr.bf16.mxu0 %v963
      %1134 = vmatmul.mubr.bf16.gmra.mrb[0].mxu0 %v962
      %v1135 = vpop.f32.mrb[0].mxu0
      %v1136 = vadd.f32 %v1003, %v1135
      %v1137 = vpop.f32.mrb[0].mxu0
      %v1138 = vpop.f32.mrb[0].mxu0
      %v1139 = vadd.f32 %v1003, %v1138
      %v1140 = vpop.f32.mrb[0].mxu0
      %1141 = vmatprep.mubr.bf16.mxu0 %v965
      %1142 = vmatmul.mubr.bf16.gmra.mrb[0].mxu0 %v964
      %v1143 = vpop.f32.mrb[0].mxu0
      %v1144 = vadd.f32 %v1003, %v1143
      %v1145 = vpop.f32.mrb[0].mxu0
      %v1146 = vpop.f32.mrb[0].mxu0
      %v1147 = vadd.f32 %v1003, %v1146
      %v1148 = vpop.f32.mrb[0].mxu0
      %1149 = vdwg.mxu0
      %vm1150 = vcmp.gt.f32.partialorder %v1136, 0.0
      %vm1151 = vcmp.gt.f32.partialorder %v1139, 0.0
      %vm1152 = vcmp.gt.f32.partialorder %v1144, 0.0
      %vm1153 = vcmp.gt.f32.partialorder %v1147, 0.0
      %v1154 = vmul.f32 %v1136, 0.2
      %v1155 = vmul.f32 %v1139, 0.2
      %v1156 = vmul.f32 %v1144, 0.2
      %v1157 = vmul.f32 %v1147, 0.2
      %v1158 = vsel %vm1150, %v1136, %v1154
      %v1159 = vsel %vm1151, %v1139, %v1155
      %v1160 = vsel %vm1152, %v1144, %v1156
      %v1161 = vsel %vm1153, %v1147, %v1157
      %v1162 = vpack.c.bf16 %v1159, %v1158
      %v1163 = vpack.c.bf16 %v1161, %v1160
      %v1164 = vld [vmem:[%s5] sm:$0xf]
      %v1165 = vld [vmem:[%s5 + $0x4] sm:$0xf]
      %v1166 = vld [vmem:[%s5 + $0x8] sm:$0xf]
      %v1167 = vld [vmem:[%s5 + $0xc] sm:$0xf]
      %v1168 = vld [vmem:[%s5 + $0x10] sm:$0xf]
      %v1169 = vld [vmem:[%s5 + $0x14] sm:$0xf]
      %v1170 = vld [vmem:[%s5 + $0x18] sm:$0xf]
      %v1171 = vld [vmem:[%s5 + $0x1c] sm:$0xf]
      %v1172 = vld [vmem:[%s5 + $0x20] sm:$0xf]
      %v1173 = vld [vmem:[%s5 + $0x24] sm:$0xf]
      %v1174 = vld [vmem:[%s5 + $0x28] sm:$0xf]
      %v1175 = vld [vmem:[%s5 + $0x2c] sm:$0xf]
      %v1176 = vld [vmem:[%s5 + $0x30] sm:$0xf]
      %v1177 = vld [vmem:[%s5 + $0x34] sm:$0xf]
      %v1178 = vld [vmem:[%s5 + $0x38] sm:$0xf]
      %v1179 = vld [vmem:[%s5 + $0x3c] sm:$0xf]
      %v1180 = vld [vmem:[%s6] sm:$0x1]
      %v1182 = vlaneseq
      %v1183 = vshrl.u32 %v1182, 7
      %v1184 = vsub.s32 0, %v1183
      %v1185 = vrot.slane %v1180, %v1184
      %v1203 = vunpack.c.l.b16 %v1164
      %v1204 = vunpack.c.l.b16 %v1165
      %v1205 = vunpack.c.l.b16 %v1166
      %v1206 = vunpack.c.l.b16 %v1167
      %v1207 = vunpack.c.l.b16 %v1168
      %v1208 = vunpack.c.l.b16 %v1169
      %v1209 = vunpack.c.l.b16 %v1170
      %v1210 = vunpack.c.l.b16 %v1171
      %v1211 = vunpack.c.l.b16 %v1172
      %v1212 = vunpack.c.l.b16 %v1173
      %v1213 = vunpack.c.l.b16 %v1174
      %v1214 = vunpack.c.l.b16 %v1175
      %v1215 = vunpack.c.l.b16 %v1176
      %v1216 = vunpack.c.l.b16 %v1177
      %v1217 = vunpack.c.l.b16 %v1178
      %v1218 = vunpack.c.l.b16 %v1179
      %v1219 = vpack.c.b16 %v1204, %v1203
      %v1220 = vpack.c.b16 %v1206, %v1205
      %v1221 = vpack.c.b16 %v1208, %v1207
      %v1222 = vpack.c.b16 %v1210, %v1209
      %v1223 = vpack.c.b16 %v1212, %v1211
      %v1224 = vpack.c.b16 %v1214, %v1213
      %v1225 = vpack.c.b16 %v1216, %v1215
      %v1226 = vpack.c.b16 %v1218, %v1217
      %1235 = vmatprep.subr.bf16.mxu0 0
      %1236 = vmatpush1.bf16.msra.mxu0 %v1219
      %1237 = vmatprep.subr.bf16.mxu0 0
      %1238 = vmatpush1.bf16.msra.mxu0 %v1220
      %1239 = vmatprep.subr.bf16.mxu0 0
      %1240 = vmatpush1.bf16.msra.mxu0 %v1221
      %1241 = vmatprep.subr.bf16.mxu0 0
      %1242 = vmatpush1.bf16.msra.mxu0 %v1222
      %1243 = vmatprep.subr.bf16.mxu0 0
      %1244 = vmatpush1.bf16.msra.mxu0 %v1223
      %1245 = vmatprep.subr.bf16.mxu0 0
      %1246 = vmatpush1.bf16.msra.mxu0 %v1224
      %1247 = vmatprep.subr.bf16.mxu0 0
      %1248 = vmatpush1.bf16.msra.mxu0 %v1225
      %1249 = vmatprep.subr.bf16.mxu0 0
      %1250 = vmatpush1.bf16.msra.mxu0 %v1226
      %1251 = vmatprep.subr.bf16.mxu0 0
      %1252 = vmatpush1.bf16.msra.mxu0 0
      %1253 = vmatprep.subr.bf16.mxu0 0
      %1254 = vmatpush1.bf16.msra.mxu0 0
      %1255 = vmatprep.subr.bf16.mxu0 0
      %1256 = vmatpush1.bf16.msra.mxu0 0
      %1257 = vmatprep.subr.bf16.mxu0 0
      %1258 = vmatpush1.bf16.msra.mxu0 0
      %1259 = vmatprep.subr.bf16.mxu0 0
      %1260 = vmatpush1.bf16.msra.mxu0 0
      %1261 = vmatprep.subr.bf16.mxu0 0
      %1262 = vmatpush1.bf16.msra.mxu0 0
      %1263 = vmatprep.subr.bf16.mxu0 0
      %1264 = vmatpush1.bf16.msra.mxu0 0
      %1265 = vmatprep.subr.bf16.mxu0 0
      %1266 = vmatpush1.bf16.msra.mxu0 0
      %1267 = vmatprep.mubr.bf16.mxu0 0
      %1268 = vmatmul.mubr.bf16.gmra.mrb[0].mxu0 %v1162
      %v1269 = vpop.f32.mrb[0].mxu0
      %v1270 = vadd.f32 %v1185, %v1269
      %v1271 = vpop.f32.mrb[0].mxu0
      %v1272 = vpop.f32.mrb[0].mxu0
      %v1273 = vadd.f32 %v1185, %v1272
      %v1274 = vpop.f32.mrb[0].mxu0
      %1275 = vmatprep.mubr.bf16.mxu0 0
      %1276 = vmatmul.mubr.bf16.gmra.mrb[0].mxu0 %v1163
      %v1277 = vpop.f32.mrb[0].mxu0
      %v1278 = vadd.f32 %v1185, %v1277
      %v1279 = vpop.f32.mrb[0].mxu0
      %v1280 = vpop.f32.mrb[0].mxu0
      %v1281 = vadd.f32 %v1185, %v1280
      %v1282 = vpop.f32.mrb[0].mxu0
      %1283 = vdwg.mxu0
      %vm1284 = vcmp.gt.f32.partialorder %v1270, 0.0
      %vm1285 = vcmp.gt.f32.partialorder %v1273, 0.0
      %vm1286 = vcmp.gt.f32.partialorder %v1278, 0.0
      %vm1287 = vcmp.gt.f32.partialorder %v1281, 0.0
      %v1288 = vmul.f32 %v1270, 0.2
      %v1289 = vmul.f32 %v1273, 0.2
      %v1290 = vmul.f32 %v1278, 0.2
      %v1291 = vmul.f32 %v1281, 0.2
      %v1292 = vsel %vm1284, %v1270, %v1288
      %v1293 = vsel %vm1285, %v1273, %v1289
      %v1294 = vsel %vm1286, %v1278, %v1290
      %v1295 = vsel %vm1287, %v1281, %v1291
      %v1296 = vpack.c.bf16 %v1293, %v1292
      %v1297 = vpack.c.bf16 %v1295, %v1294
      %v1298 = vld [vmem:[%s7] sm:$0xf]
      %v1299 = vld [vmem:[%s7 + $0x4] sm:$0xf]
      %v1300 = vld [vmem:[%s7 + $0x8] sm:$0xf]
      %v1301 = vld [vmem:[%s7 + $0xc] sm:$0xf]
      %v1302 = vld [vmem:[%s7 + $0x10] sm:$0xf]
      %v1303 = vld [vmem:[%s7 + $0x14] sm:$0xf]
      %v1304 = vld [vmem:[%s7 + $0x18] sm:$0xf]
      %v1305 = vld [vmem:[%s7 + $0x1c] sm:$0xf]
      %v1306 = vld [vmem:[%s7 + $0x20] sm:$0xf]
      %v1307 = vld [vmem:[%s7 + $0x24] sm:$0xf]
      %v1308 = vld [vmem:[%s7 + $0x28] sm:$0xf]
      %v1309 = vld [vmem:[%s7 + $0x2c] sm:$0xf]
      %v1310 = vld [vmem:[%s7 + $0x30] sm:$0xf]
      %v1311 = vld [vmem:[%s7 + $0x34] sm:$0xf]
      %v1312 = vld [vmem:[%s7 + $0x38] sm:$0xf]
      %v1313 = vld [vmem:[%s7 + $0x3c] sm:$0xf]
      %v1314 = vld [vmem:[%s8] sm:$0x1]
      %v1316 = vlaneseq
      %v1317 = vshrl.u32 %v1316, 7
      %v1318 = vsub.s32 0, %v1317
      %v1319 = vrot.slane %v1314, %v1318
      %v1337 = vunpack.c.l.b16 %v1298
      %v1338 = vunpack.c.l.b16 %v1299
      %v1339 = vunpack.c.l.b16 %v1300
      %v1340 = vunpack.c.l.b16 %v1301
      %v1341 = vunpack.c.l.b16 %v1302
      %v1342 = vunpack.c.l.b16 %v1303
      %v1343 = vunpack.c.l.b16 %v1304
      %v1344 = vunpack.c.l.b16 %v1305
      %v1345 = vunpack.c.l.b16 %v1306
      %v1346 = vunpack.c.l.b16 %v1307
      %v1347 = vunpack.c.l.b16 %v1308
      %v1348 = vunpack.c.l.b16 %v1309
      %v1349 = vunpack.c.l.b16 %v1310
      %v1350 = vunpack.c.l.b16 %v1311
      %v1351 = vunpack.c.l.b16 %v1312
      %v1352 = vunpack.c.l.b16 %v1313
      %v1353 = vpack.c.b16 %v1338, %v1337
      %v1354 = vpack.c.b16 %v1340, %v1339
      %v1355 = vpack.c.b16 %v1342, %v1341
      %v1356 = vpack.c.b16 %v1344, %v1343
      %v1357 = vpack.c.b16 %v1346, %v1345
      %v1358 = vpack.c.b16 %v1348, %v1347
      %v1359 = vpack.c.b16 %v1350, %v1349
      %v1360 = vpack.c.b16 %v1352, %v1351
      %1369 = vmatprep.subr.bf16.mxu0 0
      %1370 = vmatpush1.bf16.msra.mxu0 %v1353
      %1371 = vmatprep.subr.bf16.mxu0 0
      %1372 = vmatpush1.bf16.msra.mxu0 %v1354
      %1373 = vmatprep.subr.bf16.mxu0 0
      %1374 = vmatpush1.bf16.msra.mxu0 %v1355
      %1375 = vmatprep.subr.bf16.mxu0 0
      %1376 = vmatpush1.bf16.msra.mxu0 %v1356
      %1377 = vmatprep.subr.bf16.mxu0 0
      %1378 = vmatpush1.bf16.msra.mxu0 %v1357
      %1379 = vmatprep.subr.bf16.mxu0 0
      %1380 = vmatpush1.bf16.msra.mxu0 %v1358
      %1381 = vmatprep.subr.bf16.mxu0 0
      %1382 = vmatpush1.bf16.msra.mxu0 %v1359
      %1383 = vmatprep.subr.bf16.mxu0 0
      %1384 = vmatpush1.bf16.msra.mxu0 %v1360
      %1385 = vmatprep.subr.bf16.mxu0 0
      %1386 = vmatpush1.bf16.msra.mxu0 0
      %1387 = vmatprep.subr.bf16.mxu0 0
      %1388 = vmatpush1.bf16.msra.mxu0 0
      %1389 = vmatprep.subr.bf16.mxu0 0
      %1390 = vmatpush1.bf16.msra.mxu0 0
      %1391 = vmatprep.subr.bf16.mxu0 0
      %1392 = vmatpush1.bf16.msra.mxu0 0
      %1393 = vmatprep.subr.bf16.mxu0 0
      %1394 = vmatpush1.bf16.msra.mxu0 0
      %1395 = vmatprep.subr.bf16.mxu0 0
      %1396 = vmatpush1.bf16.msra.mxu0 0
      %1397 = vmatprep.subr.bf16.mxu0 0
      %1398 = vmatpush1.bf16.msra.mxu0 0
      %1399 = vmatprep.subr.bf16.mxu0 0
      %1400 = vmatpush1.bf16.msra.mxu0 0
      %1401 = vmatprep.mubr.bf16.mxu0 0
      %1402 = vmatmul.mubr.bf16.gmra.mrb[0].mxu0 %v1296
      %v1403 = vpop.f32.mrb[0].mxu0
      %v1404 = vadd.f32 %v1319, %v1403
      %v1405 = vpop.f32.mrb[0].mxu0
      %v1406 = vpop.f32.mrb[0].mxu0
      %v1407 = vadd.f32 %v1319, %v1406
      %v1408 = vpop.f32.mrb[0].mxu0
      %1409 = vmatprep.mubr.bf16.mxu0 0
      %1410 = vmatmul.mubr.bf16.gmra.mrb[0].mxu0 %v1297
      %v1411 = vpop.f32.mrb[0].mxu0
      %v1412 = vadd.f32 %v1319, %v1411
      %v1413 = vpop.f32.mrb[0].mxu0
      %v1414 = vpop.f32.mrb[0].mxu0
      %v1415 = vadd.f32 %v1319, %v1414
      %v1416 = vpop.f32.mrb[0].mxu0
      %1417 = vdwg.mxu0
      %vm1418 = vcmp.gt.f32.partialorder %v1404, 0.0
      %vm1419 = vcmp.gt.f32.partialorder %v1407, 0.0
      %vm1420 = vcmp.gt.f32.partialorder %v1412, 0.0
      %vm1421 = vcmp.gt.f32.partialorder %v1415, 0.0
      %v1422 = vmul.f32 %v1404, 0.2
      %v1423 = vmul.f32 %v1407, 0.2
      %v1424 = vmul.f32 %v1412, 0.2
      %v1425 = vmul.f32 %v1415, 0.2
      %v1426 = vsel %vm1418, %v1404, %v1422
      %v1427 = vsel %vm1419, %v1407, %v1423
      %v1428 = vsel %vm1420, %v1412, %v1424
      %v1429 = vsel %vm1421, %v1415, %v1425
      %v1430 = vpack.c.bf16 %v1427, %v1426
      %v1431 = vpack.c.bf16 %v1429, %v1428
      %v1432 = vld [vmem:[%s9] sm:$0xf]
      %v1433 = vld [vmem:[%s9 + $0x4] sm:$0xf]
      %v1434 = vld [vmem:[%s9 + $0x8] sm:$0xf]
      %v1435 = vld [vmem:[%s9 + $0xc] sm:$0xf]
      %v1436 = vld [vmem:[%s9 + $0x10] sm:$0xf]
      %v1437 = vld [vmem:[%s9 + $0x14] sm:$0xf]
      %v1438 = vld [vmem:[%s9 + $0x18] sm:$0xf]
      %v1439 = vld [vmem:[%s9 + $0x1c] sm:$0xf]
      %v1440 = vld [vmem:[%s9 + $0x20] sm:$0xf]
      %v1441 = vld [vmem:[%s9 + $0x24] sm:$0xf]
      %v1442 = vld [vmem:[%s9 + $0x28] sm:$0xf]
      %v1443 = vld [vmem:[%s9 + $0x2c] sm:$0xf]
      %v1444 = vld [vmem:[%s9 + $0x30] sm:$0xf]
      %v1445 = vld [vmem:[%s9 + $0x34] sm:$0xf]
      %v1446 = vld [vmem:[%s9 + $0x38] sm:$0xf]
      %v1447 = vld [vmem:[%s9 + $0x3c] sm:$0xf]
      %v1448 = vld [vmem:[%s10] sm:$0x1]
      %v1450 = vlaneseq
      %v1451 = vshrl.u32 %v1450, 7
      %v1452 = vsub.s32 0, %v1451
      %v1453 = vrot.slane %v1448, %v1452
      %v1471 = vunpack.c.l.b16 %v1432
      %v1472 = vunpack.c.l.b16 %v1433
      %v1473 = vunpack.c.l.b16 %v1434
      %v1474 = vunpack.c.l.b16 %v1435
      %v1475 = vunpack.c.l.b16 %v1436
      %v1476 = vunpack.c.l.b16 %v1437
      %v1477 = vunpack.c.l.b16 %v1438
      %v1478 = vunpack.c.l.b16 %v1439
      %v1479 = vunpack.c.l.b16 %v1440
      %v1480 = vunpack.c.l.b16 %v1441
      %v1481 = vunpack.c.l.b16 %v1442
      %v1482 = vunpack.c.l.b16 %v1443
      %v1483 = vunpack.c.l.b16 %v1444
      %v1484 = vunpack.c.l.b16 %v1445
      %v1485 = vunpack.c.l.b16 %v1446
      %v1486 = vunpack.c.l.b16 %v1447
      %v1487 = vpack.c.b16 %v1472, %v1471
      %v1488 = vpack.c.b16 %v1474, %v1473
      %v1489 = vpack.c.b16 %v1476, %v1475
      %v1490 = vpack.c.b16 %v1478, %v1477
      %v1491 = vpack.c.b16 %v1480, %v1479
      %v1492 = vpack.c.b16 %v1482, %v1481
      %v1493 = vpack.c.b16 %v1484, %v1483
      %v1494 = vpack.c.b16 %v1486, %v1485
      %1503 = vmatprep.subr.bf16.mxu0 0
      %1504 = vmatpush1.bf16.msra.mxu0 %v1487
      %1505 = vmatprep.subr.bf16.mxu0 0
      %1506 = vmatpush1.bf16.msra.mxu0 %v1488
      %1507 = vmatprep.subr.bf16.mxu0 0
      %1508 = vmatpush1.bf16.msra.mxu0 %v1489
      %1509 = vmatprep.subr.bf16.mxu0 0
      %1510 = vmatpush1.bf16.msra.mxu0 %v1490
      %1511 = vmatprep.subr.bf16.mxu0 0
      %1512 = vmatpush1.bf16.msra.mxu0 %v1491
      %1513 = vmatprep.subr.bf16.mxu0 0
      %1514 = vmatpush1.bf16.msra.mxu0 %v1492
      %1515 = vmatprep.subr.bf16.mxu0 0
      %1516 = vmatpush1.bf16.msra.mxu0 %v1493
      %1517 = vmatprep.subr.bf16.mxu0 0
      %1518 = vmatpush1.bf16.msra.mxu0 %v1494
      %1519 = vmatprep.subr.bf16.mxu0 0
      %1520 = vmatpush1.bf16.msra.mxu0 0
      %1521 = vmatprep.subr.bf16.mxu0 0
      %1522 = vmatpush1.bf16.msra.mxu0 0
      %1523 = vmatprep.subr.bf16.mxu0 0
      %1524 = vmatpush1.bf16.msra.mxu0 0
      %1525 = vmatprep.subr.bf16.mxu0 0
      %1526 = vmatpush1.bf16.msra.mxu0 0
      %1527 = vmatprep.subr.bf16.mxu0 0
      %1528 = vmatpush1.bf16.msra.mxu0 0
      %1529 = vmatprep.subr.bf16.mxu0 0
      %1530 = vmatpush1.bf16.msra.mxu0 0
      %1531 = vmatprep.subr.bf16.mxu0 0
      %1532 = vmatpush1.bf16.msra.mxu0 0
      %1533 = vmatprep.subr.bf16.mxu0 0
      %1534 = vmatpush1.bf16.msra.mxu0 0
      %1535 = vmatprep.mubr.bf16.mxu0 0
      %1536 = vmatmul.mubr.bf16.gmra.mrb[0].mxu0 %v1430
      %v1537 = vpop.f32.mrb[0].mxu0
      %v1538 = vadd.f32 %v1453, %v1537
      %v1539 = vpop.f32.mrb[0].mxu0
      %v1540 = vpop.f32.mrb[0].mxu0
      %v1541 = vadd.f32 %v1453, %v1540
      %v1542 = vpop.f32.mrb[0].mxu0
      %1543 = vmatprep.mubr.bf16.mxu0 0
      %1544 = vmatmul.mubr.bf16.gmra.mrb[0].mxu0 %v1431
      %v1545 = vpop.f32.mrb[0].mxu0
      %v1546 = vadd.f32 %v1453, %v1545
      %v1547 = vpop.f32.mrb[0].mxu0
      %v1548 = vpop.f32.mrb[0].mxu0
      %v1549 = vadd.f32 %v1453, %v1548
      %v1550 = vpop.f32.mrb[0].mxu0
      %1551 = vdwg.mxu0
      %vm1552 = vcmp.gt.f32.partialorder %v1538, 0.0
      %vm1553 = vcmp.gt.f32.partialorder %v1541, 0.0
      %vm1554 = vcmp.gt.f32.partialorder %v1546, 0.0
      %vm1555 = vcmp.gt.f32.partialorder %v1549, 0.0
      %v1556 = vmul.f32 %v1538, 0.2
      %v1557 = vmul.f32 %v1541, 0.2
      %v1558 = vmul.f32 %v1546, 0.2
      %v1559 = vmul.f32 %v1549, 0.2
      %v1560 = vsel %vm1552, %v1538, %v1556
      %v1561 = vsel %vm1553, %v1541, %v1557
      %v1562 = vsel %vm1554, %v1546, %v1558
      %v1563 = vsel %vm1555, %v1549, %v1559
      %v1564 = vpack.c.bf16 %v1561, %v1560
      %v1565 = vpack.c.bf16 %v1563, %v1562
      %v1566 = vld [vmem:[%s11] sm:$0xf]
      %v1567 = vld [vmem:[%s11 + $0x4] sm:$0xf]
      %v1568 = vld [vmem:[%s11 + $0x8] sm:$0xf]
      %v1569 = vld [vmem:[%s11 + $0xc] sm:$0xf]
      %v1570 = vld [vmem:[%s11 + $0x10] sm:$0xf]
      %v1571 = vld [vmem:[%s11 + $0x14] sm:$0xf]
      %v1572 = vld [vmem:[%s11 + $0x18] sm:$0xf]
      %v1573 = vld [vmem:[%s11 + $0x1c] sm:$0xf]
      %v1574 = vld [vmem:[%s11 + $0x20] sm:$0xf]
      %v1575 = vld [vmem:[%s11 + $0x24] sm:$0xf]
      %v1576 = vld [vmem:[%s11 + $0x28] sm:$0xf]
      %v1577 = vld [vmem:[%s11 + $0x2c] sm:$0xf]
      %v1578 = vld [vmem:[%s11 + $0x30] sm:$0xf]
      %v1579 = vld [vmem:[%s11 + $0x34] sm:$0xf]
      %v1580 = vld [vmem:[%s11 + $0x38] sm:$0xf]
      %v1581 = vld [vmem:[%s11 + $0x3c] sm:$0xf]
      %v1582 = vld [vmem:[%s12] sm:$0x1]
      %v1584 = vlaneseq
      %v1585 = vshrl.u32 %v1584, 7
      %v1586 = vsub.s32 0, %v1585
      %v1587 = vrot.slane %v1582, %v1586
      %v1605 = vunpack.c.l.b16 %v1566
      %v1606 = vunpack.c.l.b16 %v1567
      %v1607 = vunpack.c.l.b16 %v1568
      %v1608 = vunpack.c.l.b16 %v1569
      %v1609 = vunpack.c.l.b16 %v1570
      %v1610 = vunpack.c.l.b16 %v1571
      %v1611 = vunpack.c.l.b16 %v1572
      %v1612 = vunpack.c.l.b16 %v1573
      %v1613 = vunpack.c.l.b16 %v1574
      %v1614 = vunpack.c.l.b16 %v1575
      %v1615 = vunpack.c.l.b16 %v1576
      %v1616 = vunpack.c.l.b16 %v1577
      %v1617 = vunpack.c.l.b16 %v1578
      %v1618 = vunpack.c.l.b16 %v1579
      %v1619 = vunpack.c.l.b16 %v1580
      %v1620 = vunpack.c.l.b16 %v1581
      %v1621 = vpack.c.b16 %v1606, %v1605
      %v1622 = vpack.c.b16 %v1608, %v1607
      %v1623 = vpack.c.b16 %v1610, %v1609
      %v1624 = vpack.c.b16 %v1612, %v1611
      %v1625 = vpack.c.b16 %v1614, %v1613
      %v1626 = vpack.c.b16 %v1616, %v1615
      %v1627 = vpack.c.b16 %v1618, %v1617
      %v1628 = vpack.c.b16 %v1620, %v1619
      %1637 = vmatprep.subr.bf16.mxu0 0
      %1638 = vmatpush1.bf16.msra.mxu0 %v1621
      %1639 = vmatprep.subr.bf16.mxu0 0
      %1640 = vmatpush1.bf16.msra.mxu0 %v1622
      %1641 = vmatprep.subr.bf16.mxu0 0
      %1642 = vmatpush1.bf16.msra.mxu0 %v1623
      %1643 = vmatprep.subr.bf16.mxu0 0
      %1644 = vmatpush1.bf16.msra.mxu0 %v1624
      %1645 = vmatprep.subr.bf16.mxu0 0
      %1646 = vmatpush1.bf16.msra.mxu0 %v1625
      %1647 = vmatprep.subr.bf16.mxu0 0
      %1648 = vmatpush1.bf16.msra.mxu0 %v1626
      %1649 = vmatprep.subr.bf16.mxu0 0
      %1650 = vmatpush1.bf16.msra.mxu0 %v1627
      %1651 = vmatprep.subr.bf16.mxu0 0
      %1652 = vmatpush1.bf16.msra.mxu0 %v1628
      %1653 = vmatprep.subr.bf16.mxu0 0
      %1654 = vmatpush1.bf16.msra.mxu0 0
      %1655 = vmatprep.subr.bf16.mxu0 0
      %1656 = vmatpush1.bf16.msra.mxu0 0
      %1657 = vmatprep.subr.bf16.mxu0 0
      %1658 = vmatpush1.bf16.msra.mxu0 0
      %1659 = vmatprep.subr.bf16.mxu0 0
      %1660 = vmatpush1.bf16.msra.mxu0 0
      %1661 = vmatprep.subr.bf16.mxu0 0
      %1662 = vmatpush1.bf16.msra.mxu0 0
      %1663 = vmatprep.subr.bf16.mxu0 0
      %1664 = vmatpush1.bf16.msra.mxu0 0
      %1665 = vmatprep.subr.bf16.mxu0 0
      %1666 = vmatpush1.bf16.msra.mxu0 0
      %1667 = vmatprep.subr.bf16.mxu0 0
      %1668 = vmatpush1.bf16.msra.mxu0 0
      %1669 = vmatprep.mubr.bf16.mxu0 0
      %1670 = vmatmul.mubr.bf16.gmra.mrb[0].mxu0 %v1564
      %v1671 = vpop.f32.mrb[0].mxu0
      %v1672 = vadd.f32 %v1587, %v1671
      %v1673 = vpop.f32.mrb[0].mxu0
      %v1674 = vpop.f32.mrb[0].mxu0
      %v1675 = vadd.f32 %v1587, %v1674
      %v1676 = vpop.f32.mrb[0].mxu0
      %1677 = vmatprep.mubr.bf16.mxu0 0
      %1678 = vmatmul.mubr.bf16.gmra.mrb[0].mxu0 %v1565
      %v1679 = vpop.f32.mrb[0].mxu0
      %v1680 = vadd.f32 %v1587, %v1679
      %v1681 = vpop.f32.mrb[0].mxu0
      %v1682 = vpop.f32.mrb[0].mxu0
      %v1683 = vadd.f32 %v1587, %v1682
      %v1684 = vpop.f32.mrb[0].mxu0
      %1685 = vdwg.mxu0
      %vm1686 = vcmp.gt.f32.partialorder %v1672, 0.0
      %vm1687 = vcmp.gt.f32.partialorder %v1675, 0.0
      %vm1688 = vcmp.gt.f32.partialorder %v1680, 0.0
      %vm1689 = vcmp.gt.f32.partialorder %v1683, 0.0
      %v1690 = vmul.f32 %v1672, 0.2
      %v1691 = vmul.f32 %v1675, 0.2
      %v1692 = vmul.f32 %v1680, 0.2
      %v1693 = vmul.f32 %v1683, 0.2
      %v1694 = vsel %vm1686, %v1672, %v1690
      %v1695 = vsel %vm1687, %v1675, %v1691
      %v1696 = vsel %vm1688, %v1680, %v1692
      %v1697 = vsel %vm1689, %v1683, %v1693
      %v1698 = vpack.c.bf16 %v1695, %v1694
      %v1699 = vpack.c.bf16 %v1697, %v1696
      %v1700 = vld [vmem:[%s13] sm:$0xff]
      %v1701 = vld [vmem:[%s13 + $0x8] sm:$0xff]
      %v1702 = vld [vmem:[%s13 + $0x10] sm:$0xff]
      %v1703 = vld [vmem:[%s13 + $0x18] sm:$0xff]
      %v1704 = vld [vmem:[%s13 + $0x20] sm:$0xff]
      %v1705 = vld [vmem:[%s13 + $0x28] sm:$0xff]
      %v1706 = vld [vmem:[%s13 + $0x30] sm:$0xff]
      %v1707 = vld [vmem:[%s13 + $0x38] sm:$0xff]
      %v1708 = vld [vmem:[%s13 + $0x40] sm:$0xff]
      %v1709 = vld [vmem:[%s13 + $0x48] sm:$0xff]
      %v1710 = vld [vmem:[%s13 + $0x50] sm:$0xff]
      %v1711 = vld [vmem:[%s13 + $0x58] sm:$0xff]
      %v1712 = vld [vmem:[%s13 + $0x60] sm:$0xff]
      %v1713 = vld [vmem:[%s13 + $0x68] sm:$0xff]
      %v1714 = vld [vmem:[%s13 + $0x70] sm:$0xff]
      %v1715 = vld [vmem:[%s13 + $0x78] sm:$0xff]
      %v1716 = vld [vmem:[%s14] sm:$0x3]
      %v1718 = vlaneseq
      %v1719 = vshrl.u32 %v1718, 7
      %v1720 = vsub.s32 0, %v1719
      %v1721 = vrot.slane %v1716, %v1720
      %v1722 = vlaneseq
      %v1723 = vshrl.u32 %v1722, 7
      %v1724 = vsub.s32 1, %v1723
      %v1725 = vrot.slane %v1716, %v1724
      %v1744 = vunpack.c.l.b16 %v1700
      %v1745 = vunpack.c.h.b16 %v1700
      %v1746 = vunpack.c.l.b16 %v1701
      %v1747 = vunpack.c.h.b16 %v1701
      %v1748 = vunpack.c.l.b16 %v1702
      %v1749 = vunpack.c.h.b16 %v1702
      %v1750 = vunpack.c.l.b16 %v1703
      %v1751 = vunpack.c.h.b16 %v1703
      %v1752 = vunpack.c.l.b16 %v1704
      %v1753 = vunpack.c.h.b16 %v1704
      %v1754 = vunpack.c.l.b16 %v1705
      %v1755 = vunpack.c.h.b16 %v1705
      %v1756 = vunpack.c.l.b16 %v1706
      %v1757 = vunpack.c.h.b16 %v1706
      %v1758 = vunpack.c.l.b16 %v1707
      %v1759 = vunpack.c.h.b16 %v1707
      %v1760 = vunpack.c.l.b16 %v1708
      %v1761 = vunpack.c.h.b16 %v1708
      %v1762 = vunpack.c.l.b16 %v1709
      %v1763 = vunpack.c.h.b16 %v1709
      %v1764 = vunpack.c.l.b16 %v1710
      %v1765 = vunpack.c.h.b16 %v1710
      %v1766 = vunpack.c.l.b16 %v1711
      %v1767 = vunpack.c.h.b16 %v1711
      %v1768 = vunpack.c.l.b16 %v1712
      %v1769 = vunpack.c.h.b16 %v1712
      %v1770 = vunpack.c.l.b16 %v1713
      %v1771 = vunpack.c.h.b16 %v1713
      %v1772 = vunpack.c.l.b16 %v1714
      %v1773 = vunpack.c.h.b16 %v1714
      %v1774 = vunpack.c.l.b16 %v1715
      %v1775 = vunpack.c.h.b16 %v1715
      %v1776 = vpack.c.b16 %v1746, %v1744
      %v1777 = vpack.c.b16 %v1747, %v1745
      %v1778 = vpack.c.b16 %v1750, %v1748
      %v1779 = vpack.c.b16 %v1751, %v1749
      %v1780 = vpack.c.b16 %v1754, %v1752
      %v1781 = vpack.c.b16 %v1755, %v1753
      %v1782 = vpack.c.b16 %v1758, %v1756
      %v1783 = vpack.c.b16 %v1759, %v1757
      %v1784 = vpack.c.b16 %v1762, %v1760
      %v1785 = vpack.c.b16 %v1763, %v1761
      %v1786 = vpack.c.b16 %v1766, %v1764
      %v1787 = vpack.c.b16 %v1767, %v1765
      %v1788 = vpack.c.b16 %v1770, %v1768
      %v1789 = vpack.c.b16 %v1771, %v1769
      %v1790 = vpack.c.b16 %v1774, %v1772
      %v1791 = vpack.c.b16 %v1775, %v1773
      %1808 = vmatprep.subr.bf16.mxu0 %v1777
      %1809 = vmatpush1.bf16.msra.mxu0 %v1776
      %1810 = vmatprep.subr.bf16.mxu0 %v1779
      %1811 = vmatpush1.bf16.msra.mxu0 %v1778
      %1812 = vmatprep.subr.bf16.mxu0 %v1781
      %1813 = vmatpush1.bf16.msra.mxu0 %v1780
      %1814 = vmatprep.subr.bf16.mxu0 %v1783
      %1815 = vmatpush1.bf16.msra.mxu0 %v1782
      %1816 = vmatprep.subr.bf16.mxu0 %v1785
      %1817 = vmatpush1.bf16.msra.mxu0 %v1784
      %1818 = vmatprep.subr.bf16.mxu0 %v1787
      %1819 = vmatpush1.bf16.msra.mxu0 %v1786
      %1820 = vmatprep.subr.bf16.mxu0 %v1789
      %1821 = vmatpush1.bf16.msra.mxu0 %v1788
      %1822 = vmatprep.subr.bf16.mxu0 %v1791
      %1823 = vmatpush1.bf16.msra.mxu0 %v1790
      %1824 = vmatprep.subr.bf16.mxu0 0
      %1825 = vmatpush1.bf16.msra.mxu0 0
      %1826 = vmatprep.subr.bf16.mxu0 0
      %1827 = vmatpush1.bf16.msra.mxu0 0
      %1828 = vmatprep.subr.bf16.mxu0 0
      %1829 = vmatpush1.bf16.msra.mxu0 0
      %1830 = vmatprep.subr.bf16.mxu0 0
      %1831 = vmatpush1.bf16.msra.mxu0 0
      %1832 = vmatprep.subr.bf16.mxu0 0
      %1833 = vmatpush1.bf16.msra.mxu0 0
      %1834 = vmatprep.subr.bf16.mxu0 0
      %1835 = vmatpush1.bf16.msra.mxu0 0
      %1836 = vmatprep.subr.bf16.mxu0 0
      %1837 = vmatpush1.bf16.msra.mxu0 0
      %1838 = vmatprep.subr.bf16.mxu0 0
      %1839 = vmatpush1.bf16.msra.mxu0 0
      %1840 = vmatprep.mubr.bf16.mxu0 0
      %1841 = vmatmul.mubr.bf16.gmra.mrb[0].mxu0 %v1698
      %v1842 = vpop.f32.mrb[0].mxu0
      %v1843 = vadd.f32 %v1721, %v1842
      %v1844 = vpop.f32.mrb[0].mxu0
      %v1845 = vadd.f32 %v1725, %v1844
      %v1846 = vpop.f32.mrb[0].mxu0
      %v1847 = vadd.f32 %v1721, %v1846
      %v1848 = vpop.f32.mrb[0].mxu0
      %v1849 = vadd.f32 %v1725, %v1848
      %1850 = vmatprep.mubr.bf16.mxu0 0
      %1851 = vmatmul.mubr.bf16.gmra.mrb[0].mxu0 %v1699
      %v1852 = vpop.f32.mrb[0].mxu0
      %v1853 = vadd.f32 %v1721, %v1852
      %v1854 = vpop.f32.mrb[0].mxu0
      %v1855 = vadd.f32 %v1725, %v1854
      %v1856 = vpop.f32.mrb[0].mxu0
      %v1857 = vadd.f32 %v1721, %v1856
      %v1858 = vpop.f32.mrb[0].mxu0
      %v1859 = vadd.f32 %v1725, %v1858
      %1860 = vdwg.mxu0
      %vm1861 = vcmp.gt.f32.partialorder %v1843, 0.0
      %vm1862 = vcmp.gt.f32.partialorder %v1845, 0.0
      %vm1863 = vcmp.gt.f32.partialorder %v1847, 0.0
      %vm1864 = vcmp.gt.f32.partialorder %v1849, 0.0
      %vm1865 = vcmp.gt.f32.partialorder %v1853, 0.0
      %vm1866 = vcmp.gt.f32.partialorder %v1855, 0.0
      %vm1867 = vcmp.gt.f32.partialorder %v1857, 0.0
      %vm1868 = vcmp.gt.f32.partialorder %v1859, 0.0
      %v1869 = vmul.f32 %v1843, 0.2
      %v1870 = vmul.f32 %v1845, 0.2
      %v1871 = vmul.f32 %v1847, 0.2
      %v1872 = vmul.f32 %v1849, 0.2
      %v1873 = vmul.f32 %v1853, 0.2
      %v1874 = vmul.f32 %v1855, 0.2
      %v1875 = vmul.f32 %v1857, 0.2
      %v1876 = vmul.f32 %v1859, 0.2
      %v1877 = vsel %vm1861, %v1843, %v1869
      %v1878 = vsel %vm1862, %v1845, %v1870
      %v1879 = vsel %vm1863, %v1847, %v1871
      %v1880 = vsel %vm1864, %v1849, %v1872
      %v1881 = vsel %vm1865, %v1853, %v1873
      %v1882 = vsel %vm1866, %v1855, %v1874
      %v1883 = vsel %vm1867, %v1857, %v1875
      %v1884 = vsel %vm1868, %v1859, %v1876
      %v1885 = vpack.c.bf16 %v1879, %v1877
      %v1886 = vpack.c.bf16 %v1880, %v1878
      %v1887 = vpack.c.bf16 %v1883, %v1881
      %v1888 = vpack.c.bf16 %v1884, %v1882
      %v1889 = vld [vmem:[%s15] sm:$0xf]
      %v1890 = vld [vmem:[%s15 + $0x4] sm:$0xf]
      %v1891 = vld [vmem:[%s15 + $0x8] sm:$0xf]
      %v1892 = vld [vmem:[%s15 + $0xc] sm:$0xf]
      %v1893 = vld [vmem:[%s15 + $0x10] sm:$0xf]
      %v1894 = vld [vmem:[%s15 + $0x14] sm:$0xf]
      %v1895 = vld [vmem:[%s15 + $0x18] sm:$0xf]
      %v1896 = vld [vmem:[%s15 + $0x1c] sm:$0xf]
      %v1897 = vld [vmem:[%s15 + $0x20] sm:$0xf]
      %v1898 = vld [vmem:[%s15 + $0x24] sm:$0xf]
      %v1899 = vld [vmem:[%s15 + $0x28] sm:$0xf]
      %v1900 = vld [vmem:[%s15 + $0x2c] sm:$0xf]
      %v1901 = vld [vmem:[%s15 + $0x30] sm:$0xf]
      %v1902 = vld [vmem:[%s15 + $0x34] sm:$0xf]
      %v1903 = vld [vmem:[%s15 + $0x38] sm:$0xf]
      %v1904 = vld [vmem:[%s15 + $0x3c] sm:$0xf]
      %v1905 = vld [vmem:[%s15 + $0x40] sm:$0xf]
      %v1906 = vld [vmem:[%s15 + $0x44] sm:$0xf]
      %v1907 = vld [vmem:[%s15 + $0x48] sm:$0xf]
      %v1908 = vld [vmem:[%s15 + $0x4c] sm:$0xf]
      %v1909 = vld [vmem:[%s15 + $0x50] sm:$0xf]
      %v1910 = vld [vmem:[%s15 + $0x54] sm:$0xf]
      %v1911 = vld [vmem:[%s15 + $0x58] sm:$0xf]
      %v1912 = vld [vmem:[%s15 + $0x5c] sm:$0xf]
      %v1913 = vld [vmem:[%s15 + $0x60] sm:$0xf]
      %v1914 = vld [vmem:[%s15 + $0x64] sm:$0xf]
      %v1915 = vld [vmem:[%s15 + $0x68] sm:$0xf]
      %v1916 = vld [vmem:[%s15 + $0x6c] sm:$0xf]
      %v1917 = vld [vmem:[%s15 + $0x70] sm:$0xf]
      %v1918 = vld [vmem:[%s15 + $0x74] sm:$0xf]
      %v1919 = vld [vmem:[%s15 + $0x78] sm:$0xf]
      %v1920 = vld [vmem:[%s15 + $0x7c] sm:$0xf]
      %v1921 = vld [vmem:[%s16] sm:$0x1]
      %v1923 = vlaneseq
      %v1924 = vshrl.u32 %v1923, 7
      %v1925 = vsub.s32 0, %v1924
      %v1926 = vrot.slane %v1921, %v1925
      %v1960 = vunpack.c.l.b16 %v1889
      %v1961 = vunpack.c.l.b16 %v1890
      %v1962 = vunpack.c.l.b16 %v1891
      %v1963 = vunpack.c.l.b16 %v1892
      %v1964 = vunpack.c.l.b16 %v1893
      %v1965 = vunpack.c.l.b16 %v1894
      %v1966 = vunpack.c.l.b16 %v1895
      %v1967 = vunpack.c.l.b16 %v1896
      %v1968 = vunpack.c.l.b16 %v1897
      %v1969 = vunpack.c.l.b16 %v1898
      %v1970 = vunpack.c.l.b16 %v1899
      %v1971 = vunpack.c.l.b16 %v1900
      %v1972 = vunpack.c.l.b16 %v1901
      %v1973 = vunpack.c.l.b16 %v1902
      %v1974 = vunpack.c.l.b16 %v1903
      %v1975 = vunpack.c.l.b16 %v1904
      %v1976 = vunpack.c.l.b16 %v1905
      %v1977 = vunpack.c.l.b16 %v1906
      %v1978 = vunpack.c.l.b16 %v1907
      %v1979 = vunpack.c.l.b16 %v1908
      %v1980 = vunpack.c.l.b16 %v1909
      %v1981 = vunpack.c.l.b16 %v1910
      %v1982 = vunpack.c.l.b16 %v1911
      %v1983 = vunpack.c.l.b16 %v1912
      %v1984 = vunpack.c.l.b16 %v1913
      %v1985 = vunpack.c.l.b16 %v1914
      %v1986 = vunpack.c.l.b16 %v1915
      %v1987 = vunpack.c.l.b16 %v1916
      %v1988 = vunpack.c.l.b16 %v1917
      %v1989 = vunpack.c.l.b16 %v1918
      %v1990 = vunpack.c.l.b16 %v1919
      %v1991 = vunpack.c.l.b16 %v1920
      %v1992 = vpack.c.b16 %v1961, %v1960
      %v1993 = vpack.c.b16 %v1963, %v1962
      %v1994 = vpack.c.b16 %v1965, %v1964
      %v1995 = vpack.c.b16 %v1967, %v1966
      %v1996 = vpack.c.b16 %v1969, %v1968
      %v1997 = vpack.c.b16 %v1971, %v1970
      %v1998 = vpack.c.b16 %v1973, %v1972
      %v1999 = vpack.c.b16 %v1975, %v1974
      %v2000 = vpack.c.b16 %v1977, %v1976
      %v2001 = vpack.c.b16 %v1979, %v1978
      %v2002 = vpack.c.b16 %v1981, %v1980
      %v2003 = vpack.c.b16 %v1983, %v1982
      %v2004 = vpack.c.b16 %v1985, %v1984
      %v2005 = vpack.c.b16 %v1987, %v1986
      %v2006 = vpack.c.b16 %v1989, %v1988
      %v2007 = vpack.c.b16 %v1991, %v1990
      %2024 = vmatprep.subr.bf16.mxu0 0
      %2025 = vmatpush1.bf16.msra.mxu0 %v1992
      %2026 = vmatprep.subr.bf16.mxu0 0
      %2027 = vmatpush1.bf16.msra.mxu0 %v1993
      %2028 = vmatprep.subr.bf16.mxu0 0
      %2029 = vmatpush1.bf16.msra.mxu0 %v1994
      %2030 = vmatprep.subr.bf16.mxu0 0
      %2031 = vmatpush1.bf16.msra.mxu0 %v1995
      %2032 = vmatprep.subr.bf16.mxu0 0
      %2033 = vmatpush1.bf16.msra.mxu0 %v1996
      %2034 = vmatprep.subr.bf16.mxu0 0
      %2035 = vmatpush1.bf16.msra.mxu0 %v1997
      %2036 = vmatprep.subr.bf16.mxu0 0
      %2037 = vmatpush1.bf16.msra.mxu0 %v1998
      %2038 = vmatprep.subr.bf16.mxu0 0
      %2039 = vmatpush1.bf16.msra.mxu0 %v1999
      %2040 = vmatprep.subr.bf16.mxu0 0
      %2041 = vmatpush1.bf16.msra.mxu0 %v2000
      %2042 = vmatprep.subr.bf16.mxu0 0
      %2043 = vmatpush1.bf16.msra.mxu0 %v2001
      %2044 = vmatprep.subr.bf16.mxu0 0
      %2045 = vmatpush1.bf16.msra.mxu0 %v2002
      %2046 = vmatprep.subr.bf16.mxu0 0
      %2047 = vmatpush1.bf16.msra.mxu0 %v2003
      %2048 = vmatprep.subr.bf16.mxu0 0
      %2049 = vmatpush1.bf16.msra.mxu0 %v2004
      %2050 = vmatprep.subr.bf16.mxu0 0
      %2051 = vmatpush1.bf16.msra.mxu0 %v2005
      %2052 = vmatprep.subr.bf16.mxu0 0
      %2053 = vmatpush1.bf16.msra.mxu0 %v2006
      %2054 = vmatprep.subr.bf16.mxu0 0
      %2055 = vmatpush1.bf16.msra.mxu0 %v2007
      %2056 = vmatprep.mubr.bf16.mxu0 %v1886
      %2057 = vmatmul.mubr.bf16.gmra.mrb[0].mxu0 %v1885
      %v2058 = vpop.f32.mrb[0].mxu0
      %v2059 = vadd.f32 %v1926, %v2058
      %v2060 = vpop.f32.mrb[0].mxu0
      %v2061 = vpop.f32.mrb[0].mxu0
      %v2062 = vadd.f32 %v1926, %v2061
      %v2063 = vpop.f32.mrb[0].mxu0
      %2064 = vmatprep.mubr.bf16.mxu0 %v1888
      %2065 = vmatmul.mubr.bf16.gmra.mrb[0].mxu0 %v1887
      %v2066 = vpop.f32.mrb[0].mxu0
      %v2067 = vadd.f32 %v1926, %v2066
      %v2068 = vpop.f32.mrb[0].mxu0
      %v2069 = vpop.f32.mrb[0].mxu0
      %v2070 = vadd.f32 %v1926, %v2069
      %v2071 = vpop.f32.mrb[0].mxu0
      %2072 = vdwg.mxu0
      %v2073 = vxor.u32 %v2059, 2147483648
      %v2074 = vxor.u32 %v2062, 2147483648
      %v2075 = vxor.u32 %v2067, 2147483648
      %v2076 = vxor.u32 %v2070, 2147483648
      %v2077 = vmul.f32 %v2073, 1.442695
      %v2078 = vpow.pop %v2077
      %v2079 = vmul.f32 %v2074, 1.442695
      %v2080 = vpow.pop %v2079
      %v2081 = vmul.f32 %v2075, 1.442695
      %v2082 = vpow.pop %v2081
      %v2083 = vmul.f32 %v2076, 1.442695
      %v2084 = vpow.pop %v2083
      %v2085 = vadd.f32 %v2078, 1.0
      %v2086 = vadd.f32 %v2080, 1.0
      %v2087 = vadd.f32 %v2082, 1.0
      %v2088 = vadd.f32 %v2084, 1.0
      %v2089 = vrcp.pop %v2085
      %v2090 = vmul.f32 1.0, %v2089
      %v2091 = vrcp.pop %v2086
      %v2092 = vmul.f32 1.0, %v2091
      %v2093 = vrcp.pop %v2087
      %v2094 = vmul.f32 1.0, %v2093
      %v2095 = vrcp.pop %v2088
      %v2096 = vmul.f32 1.0, %v2095
      %v2097 = vpack.c.bf16 %v2092, %v2090
      %v2098 = vpack.c.bf16 %v2096, %v2094
      %v2099 = vld [vmem:[%s17] sm:$0xff]
      %v2100 = vld [vmem:[%s17 + $0x8] sm:$0xff]
      %v2101 = vld [vmem:[%s17 + $0x10] sm:$0xff]
      %v2102 = vld [vmem:[%s17 + $0x18] sm:$0xff]
      %v2103 = vld [vmem:[%s17 + $0x20] sm:$0xff]
      %v2104 = vld [vmem:[%s17 + $0x28] sm:$0xff]
      %v2105 = vld [vmem:[%s17 + $0x30] sm:$0xff]
      %v2106 = vld [vmem:[%s17 + $0x38] sm:$0xff]
      %v2107 = vld [vmem:[%s17 + $0x40] sm:$0xff]
      %v2108 = vld [vmem:[%s17 + $0x48] sm:$0xff]
      %v2109 = vld [vmem:[%s17 + $0x50] sm:$0xff]
      %v2110 = vld [vmem:[%s17 + $0x58] sm:$0xff]
      %v2111 = vld [vmem:[%s17 + $0x60] sm:$0xff]
      %v2112 = vld [vmem:[%s17 + $0x68] sm:$0xff]
      %v2113 = vld [vmem:[%s17 + $0x70] sm:$0xff]
      %v2114 = vld [vmem:[%s17 + $0x78] sm:$0xff]
      %v2115 = vld [vmem:[%s18] sm:$0x3]
      %v2117 = vlaneseq
      %v2118 = vshrl.u32 %v2117, 7
      %v2119 = vsub.s32 0, %v2118
      %v2120 = vrot.slane %v2115, %v2119
      %v2121 = vlaneseq
      %v2122 = vshrl.u32 %v2121, 7
      %v2123 = vsub.s32 1, %v2122
      %v2124 = vrot.slane %v2115, %v2123
      %v2143 = vunpack.c.l.b16 %v2099
      %v2144 = vunpack.c.h.b16 %v2099
      %v2145 = vunpack.c.l.b16 %v2100
      %v2146 = vunpack.c.h.b16 %v2100
      %v2147 = vunpack.c.l.b16 %v2101
      %v2148 = vunpack.c.h.b16 %v2101
      %v2149 = vunpack.c.l.b16 %v2102
      %v2150 = vunpack.c.h.b16 %v2102
      %v2151 = vunpack.c.l.b16 %v2103
      %v2152 = vunpack.c.h.b16 %v2103
      %v2153 = vunpack.c.l.b16 %v2104
      %v2154 = vunpack.c.h.b16 %v2104
      %v2155 = vunpack.c.l.b16 %v2105
      %v2156 = vunpack.c.h.b16 %v2105
      %v2157 = vunpack.c.l.b16 %v2106
      %v2158 = vunpack.c.h.b16 %v2106
      %v2159 = vunpack.c.l.b16 %v2107
      %v2160 = vunpack.c.h.b16 %v2107
      %v2161 = vunpack.c.l.b16 %v2108
      %v2162 = vunpack.c.h.b16 %v2108
      %v2163 = vunpack.c.l.b16 %v2109
      %v2164 = vunpack.c.h.b16 %v2109
      %v2165 = vunpack.c.l.b16 %v2110
      %v2166 = vunpack.c.h.b16 %v2110
      %v2167 = vunpack.c.l.b16 %v2111
      %v2168 = vunpack.c.h.b16 %v2111
      %v2169 = vunpack.c.l.b16 %v2112
      %v2170 = vunpack.c.h.b16 %v2112
      %v2171 = vunpack.c.l.b16 %v2113
      %v2172 = vunpack.c.h.b16 %v2113
      %v2173 = vunpack.c.l.b16 %v2114
      %v2174 = vunpack.c.h.b16 %v2114
      %v2175 = vpack.c.b16 %v2145, %v2143
      %v2176 = vpack.c.b16 %v2146, %v2144
      %v2177 = vpack.c.b16 %v2149, %v2147
      %v2178 = vpack.c.b16 %v2150, %v2148
      %v2179 = vpack.c.b16 %v2153, %v2151
      %v2180 = vpack.c.b16 %v2154, %v2152
      %v2181 = vpack.c.b16 %v2157, %v2155
      %v2182 = vpack.c.b16 %v2158, %v2156
      %v2183 = vpack.c.b16 %v2161, %v2159
      %v2184 = vpack.c.b16 %v2162, %v2160
      %v2185 = vpack.c.b16 %v2165, %v2163
      %v2186 = vpack.c.b16 %v2166, %v2164
      %v2187 = vpack.c.b16 %v2169, %v2167
      %v2188 = vpack.c.b16 %v2170, %v2168
      %v2189 = vpack.c.b16 %v2173, %v2171
      %v2190 = vpack.c.b16 %v2174, %v2172
      %2207 = vmatprep.subr.bf16.mxu0 %v2176
      %2208 = vmatpush1.bf16.msra.mxu0 %v2175
      %2209 = vmatprep.subr.bf16.mxu0 %v2178
      %2210 = vmatpush1.bf16.msra.mxu0 %v2177
      %2211 = vmatprep.subr.bf16.mxu0 %v2180
      %2212 = vmatpush1.bf16.msra.mxu0 %v2179
      %2213 = vmatprep.subr.bf16.mxu0 %v2182
      %2214 = vmatpush1.bf16.msra.mxu0 %v2181
      %2215 = vmatprep.subr.bf16.mxu0 %v2184
      %2216 = vmatpush1.bf16.msra.mxu0 %v2183
      %2217 = vmatprep.subr.bf16.mxu0 %v2186
      %2218 = vmatpush1.bf16.msra.mxu0 %v2185
      %2219 = vmatprep.subr.bf16.mxu0 %v2188
      %2220 = vmatpush1.bf16.msra.mxu0 %v2187
      %2221 = vmatprep.subr.bf16.mxu0 %v2190
      %2222 = vmatpush1.bf16.msra.mxu0 %v2189
      %2223 = vmatprep.subr.bf16.mxu0 0
      %2224 = vmatpush1.bf16.msra.mxu0 0
      %2225 = vmatprep.subr.bf16.mxu0 0
      %2226 = vmatpush1.bf16.msra.mxu0 0
      %2227 = vmatprep.subr.bf16.mxu0 0
      %2228 = vmatpush1.bf16.msra.mxu0 0
      %2229 = vmatprep.subr.bf16.mxu0 0
      %2230 = vmatpush1.bf16.msra.mxu0 0
      %2231 = vmatprep.subr.bf16.mxu0 0
      %2232 = vmatpush1.bf16.msra.mxu0 0
      %2233 = vmatprep.subr.bf16.mxu0 0
      %2234 = vmatpush1.bf16.msra.mxu0 0
      %2235 = vmatprep.subr.bf16.mxu0 0
      %2236 = vmatpush1.bf16.msra.mxu0 0
      %2237 = vmatprep.subr.bf16.mxu0 0
      %2238 = vmatpush1.bf16.msra.mxu0 0
      %2239 = vmatprep.mubr.bf16.mxu0 0
      %2240 = vmatmul.mubr.bf16.gmra.mrb[0].mxu0 %v2097
      %v2241 = vpop.f32.mrb[0].mxu0
      %v2242 = vadd.f32 %v2120, %v2241
      %v2243 = vpop.f32.mrb[0].mxu0
      %v2244 = vadd.f32 %v2124, %v2243
      %v2245 = vpop.f32.mrb[0].mxu0
      %v2246 = vadd.f32 %v2120, %v2245
      %v2247 = vpop.f32.mrb[0].mxu0
      %v2248 = vadd.f32 %v2124, %v2247
      %2249 = vmatprep.mubr.bf16.mxu0 0
      %2250 = vmatmul.mubr.bf16.gmra.mrb[0].mxu0 %v2098
      %v2251 = vpop.f32.mrb[0].mxu0
      %v2252 = vadd.f32 %v2120, %v2251
      %v2253 = vpop.f32.mrb[0].mxu0
      %v2254 = vadd.f32 %v2124, %v2253
      %v2255 = vpop.f32.mrb[0].mxu0
      %v2256 = vadd.f32 %v2120, %v2255
      %v2257 = vpop.f32.mrb[0].mxu0
      %v2258 = vadd.f32 %v2124, %v2257
      %2259 = vdwg.mxu0
      %vm2260 = vcmp.gt.f32.partialorder %v2242, 0.0
      %vm2261 = vcmp.gt.f32.partialorder %v2244, 0.0
      %vm2262 = vcmp.gt.f32.partialorder %v2246, 0.0
      %vm2263 = vcmp.gt.f32.partialorder %v2248, 0.0
      %vm2264 = vcmp.gt.f32.partialorder %v2252, 0.0
      %vm2265 = vcmp.gt.f32.partialorder %v2254, 0.0
      %vm2266 = vcmp.gt.f32.partialorder %v2256, 0.0
      %vm2267 = vcmp.gt.f32.partialorder %v2258, 0.0
      %v2268 = vmul.f32 %v2242, 0.2
      %v2269 = vmul.f32 %v2244, 0.2
      %v2270 = vmul.f32 %v2246, 0.2
      %v2271 = vmul.f32 %v2248, 0.2
      %v2272 = vmul.f32 %v2252, 0.2
      %v2273 = vmul.f32 %v2254, 0.2
      %v2274 = vmul.f32 %v2256, 0.2
      %v2275 = vmul.f32 %v2258, 0.2
      %v2276 = vsel %vm2260, %v2242, %v2268
      %v2277 = vsel %vm2261, %v2244, %v2269
      %v2278 = vsel %vm2262, %v2246, %v2270
      %v2279 = vsel %vm2263, %v2248, %v2271
      %v2280 = vsel %vm2264, %v2252, %v2272
      %v2281 = vsel %vm2265, %v2254, %v2273
      %v2282 = vsel %vm2266, %v2256, %v2274
      %v2283 = vsel %vm2267, %v2258, %v2275
      %v2284 = vpack.c.bf16 %v2278, %v2276
      %v2285 = vpack.c.bf16 %v2279, %v2277
      %v2286 = vpack.c.bf16 %v2282, %v2280
      %v2287 = vpack.c.bf16 %v2283, %v2281
      %v2288 = vld [vmem:[%s19] sm:$0xf]
      %v2289 = vld [vmem:[%s19 + $0x4] sm:$0xf]
      %v2290 = vld [vmem:[%s19 + $0x8] sm:$0xf]
      %v2291 = vld [vmem:[%s19 + $0xc] sm:$0xf]
      %v2292 = vld [vmem:[%s19 + $0x10] sm:$0xf]
      %v2293 = vld [vmem:[%s19 + $0x14] sm:$0xf]
      %v2294 = vld [vmem:[%s19 + $0x18] sm:$0xf]
      %v2295 = vld [vmem:[%s19 + $0x1c] sm:$0xf]
      %v2296 = vld [vmem:[%s19 + $0x20] sm:$0xf]
      %v2297 = vld [vmem:[%s19 + $0x24] sm:$0xf]
      %v2298 = vld [vmem:[%s19 + $0x28] sm:$0xf]
      %v2299 = vld [vmem:[%s19 + $0x2c] sm:$0xf]
      %v2300 = vld [vmem:[%s19 + $0x30] sm:$0xf]
      %v2301 = vld [vmem:[%s19 + $0x34] sm:$0xf]
      %v2302 = vld [vmem:[%s19 + $0x38] sm:$0xf]
      %v2303 = vld [vmem:[%s19 + $0x3c] sm:$0xf]
      %v2304 = vld [vmem:[%s19 + $0x40] sm:$0xf]
      %v2305 = vld [vmem:[%s19 + $0x44] sm:$0xf]
      %v2306 = vld [vmem:[%s19 + $0x48] sm:$0xf]
      %v2307 = vld [vmem:[%s19 + $0x4c] sm:$0xf]
      %v2308 = vld [vmem:[%s19 + $0x50] sm:$0xf]
      %v2309 = vld [vmem:[%s19 + $0x54] sm:$0xf]
      %v2310 = vld [vmem:[%s19 + $0x58] sm:$0xf]
      %v2311 = vld [vmem:[%s19 + $0x5c] sm:$0xf]
      %v2312 = vld [vmem:[%s19 + $0x60] sm:$0xf]
      %v2313 = vld [vmem:[%s19 + $0x64] sm:$0xf]
      %v2314 = vld [vmem:[%s19 + $0x68] sm:$0xf]
      %v2315 = vld [vmem:[%s19 + $0x6c] sm:$0xf]
      %v2316 = vld [vmem:[%s19 + $0x70] sm:$0xf]
      %v2317 = vld [vmem:[%s19 + $0x74] sm:$0xf]
      %v2318 = vld [vmem:[%s19 + $0x78] sm:$0xf]
      %v2319 = vld [vmem:[%s19 + $0x7c] sm:$0xf]
      %v2320 = vld [vmem:[%s20] sm:$0x1]
      %v2322 = vlaneseq
      %v2323 = vshrl.u32 %v2322, 7
      %v2324 = vsub.s32 0, %v2323
      %v2325 = vrot.slane %v2320, %v2324
      %v2359 = vunpack.c.l.b16 %v2288
      %v2360 = vunpack.c.l.b16 %v2289
      %v2361 = vunpack.c.l.b16 %v2290
      %v2362 = vunpack.c.l.b16 %v2291
      %v2363 = vunpack.c.l.b16 %v2292
      %v2364 = vunpack.c.l.b16 %v2293
      %v2365 = vunpack.c.l.b16 %v2294
      %v2366 = vunpack.c.l.b16 %v2295
      %v2367 = vunpack.c.l.b16 %v2296
      %v2368 = vunpack.c.l.b16 %v2297
      %v2369 = vunpack.c.l.b16 %v2298
      %v2370 = vunpack.c.l.b16 %v2299
      %v2371 = vunpack.c.l.b16 %v2300
      %v2372 = vunpack.c.l.b16 %v2301
      %v2373 = vunpack.c.l.b16 %v2302
      %v2374 = vunpack.c.l.b16 %v2303
      %v2375 = vunpack.c.l.b16 %v2304
      %v2376 = vunpack.c.l.b16 %v2305
      %v2377 = vunpack.c.l.b16 %v2306
      %v2378 = vunpack.c.l.b16 %v2307
      %v2379 = vunpack.c.l.b16 %v2308
      %v2380 = vunpack.c.l.b16 %v2309
      %v2381 = vunpack.c.l.b16 %v2310
      %v2382 = vunpack.c.l.b16 %v2311
      %v2383 = vunpack.c.l.b16 %v2312
      %v2384 = vunpack.c.l.b16 %v2313
      %v2385 = vunpack.c.l.b16 %v2314
      %v2386 = vunpack.c.l.b16 %v2315
      %v2387 = vunpack.c.l.b16 %v2316
      %v2388 = vunpack.c.l.b16 %v2317
      %v2389 = vunpack.c.l.b16 %v2318
      %v2390 = vunpack.c.l.b16 %v2319
      %v2391 = vpack.c.b16 %v2360, %v2359
      %v2392 = vpack.c.b16 %v2362, %v2361
      %v2393 = vpack.c.b16 %v2364, %v2363
      %v2394 = vpack.c.b16 %v2366, %v2365
      %v2395 = vpack.c.b16 %v2368, %v2367
      %v2396 = vpack.c.b16 %v2370, %v2369
      %v2397 = vpack.c.b16 %v2372, %v2371
      %v2398 = vpack.c.b16 %v2374, %v2373
      %v2399 = vpack.c.b16 %v2376, %v2375
      %v2400 = vpack.c.b16 %v2378, %v2377
      %v2401 = vpack.c.b16 %v2380, %v2379
      %v2402 = vpack.c.b16 %v2382, %v2381
      %v2403 = vpack.c.b16 %v2384, %v2383
      %v2404 = vpack.c.b16 %v2386, %v2385
      %v2405 = vpack.c.b16 %v2388, %v2387
      %v2406 = vpack.c.b16 %v2390, %v2389
      %2423 = vmatprep.subr.bf16.mxu0 0
      %2424 = vmatpush1.bf16.msra.mxu0 %v2391
      %2425 = vmatprep.subr.bf16.mxu0 0
      %2426 = vmatpush1.bf16.msra.mxu0 %v2392
      %2427 = vmatprep.subr.bf16.mxu0 0
      %2428 = vmatpush1.bf16.msra.mxu0 %v2393
      %2429 = vmatprep.subr.bf16.mxu0 0
      %2430 = vmatpush1.bf16.msra.mxu0 %v2394
      %2431 = vmatprep.subr.bf16.mxu0 0
      %2432 = vmatpush1.bf16.msra.mxu0 %v2395
      %2433 = vmatprep.subr.bf16.mxu0 0
      %2434 = vmatpush1.bf16.msra.mxu0 %v2396
      %2435 = vmatprep.subr.bf16.mxu0 0
      %2436 = vmatpush1.bf16.msra.mxu0 %v2397
      %2437 = vmatprep.subr.bf16.mxu0 0
      %2438 = vmatpush1.bf16.msra.mxu0 %v2398
      %2439 = vmatprep.subr.bf16.mxu0 0
      %2440 = vmatpush1.bf16.msra.mxu0 %v2399
      %2441 = vmatprep.subr.bf16.mxu0 0
      %2442 = vmatpush1.bf16.msra.mxu0 %v2400
      %2443 = vmatprep.subr.bf16.mxu0 0
      %2444 = vmatpush1.bf16.msra.mxu0 %v2401
      %2445 = vmatprep.subr.bf16.mxu0 0
      %2446 = vmatpush1.bf16.msra.mxu0 %v2402
      %2447 = vmatprep.subr.bf16.mxu0 0
      %2448 = vmatpush1.bf16.msra.mxu0 %v2403
      %2449 = vmatprep.subr.bf16.mxu0 0
      %2450 = vmatpush1.bf16.msra.mxu0 %v2404
      %2451 = vmatprep.subr.bf16.mxu0 0
      %2452 = vmatpush1.bf16.msra.mxu0 %v2405
      %2453 = vmatprep.subr.bf16.mxu0 0
      %2454 = vmatpush1.bf16.msra.mxu0 %v2406
      %2455 = vmatprep.mubr.bf16.mxu0 %v2285
      %2456 = vmatmul.mubr.bf16.gmra.mrb[0].mxu0 %v2284
      %v2457 = vpop.f32.mrb[0].mxu0
      %v2458 = vadd.f32 %v2325, %v2457
      %v2459 = vpop.f32.mrb[0].mxu0
      %v2460 = vpop.f32.mrb[0].mxu0
      %v2461 = vadd.f32 %v2325, %v2460
      %v2462 = vpop.f32.mrb[0].mxu0
      %2463 = vmatprep.mubr.bf16.mxu0 %v2287
      %2464 = vmatmul.mubr.bf16.gmra.mrb[0].mxu0 %v2286
      %v2465 = vpop.f32.mrb[0].mxu0
      %v2466 = vadd.f32 %v2325, %v2465
      %v2467 = vpop.f32.mrb[0].mxu0
      %v2468 = vpop.f32.mrb[0].mxu0
      %v2469 = vadd.f32 %v2325, %v2468
      %v2470 = vpop.f32.mrb[0].mxu0
      %2471 = vdwg.mxu0
      %vm2472 = vcmp.gt.f32.partialorder %v2458, 0.0
      %vm2473 = vcmp.gt.f32.partialorder %v2461, 0.0
      %vm2474 = vcmp.gt.f32.partialorder %v2466, 0.0
      %vm2475 = vcmp.gt.f32.partialorder %v2469, 0.0
      %v2476 = vmul.f32 %v2458, 0.2
      %v2477 = vmul.f32 %v2461, 0.2
      %v2478 = vmul.f32 %v2466, 0.2
      %v2479 = vmul.f32 %v2469, 0.2
      %v2480 = vsel %vm2472, %v2458, %v2476
      %v2481 = vsel %vm2473, %v2461, %v2477
      %v2482 = vsel %vm2474, %v2466, %v2478
      %v2483 = vsel %vm2475, %v2469, %v2479
      %v2484 = vpack.c.bf16 %v2481, %v2480
      %v2485 = vpack.c.bf16 %v2483, %v2482
      %v2486 = vld [vmem:[%s21] sm:$0xf]
      %v2487 = vld [vmem:[%s21 + $0x4] sm:$0xf]
      %v2488 = vld [vmem:[%s21 + $0x8] sm:$0xf]
      %v2489 = vld [vmem:[%s21 + $0xc] sm:$0xf]
      %v2490 = vld [vmem:[%s21 + $0x10] sm:$0xf]
      %v2491 = vld [vmem:[%s21 + $0x14] sm:$0xf]
      %v2492 = vld [vmem:[%s21 + $0x18] sm:$0xf]
      %v2493 = vld [vmem:[%s21 + $0x1c] sm:$0xf]
      %v2494 = vld [vmem:[%s21 + $0x20] sm:$0xf]
      %v2495 = vld [vmem:[%s21 + $0x24] sm:$0xf]
      %v2496 = vld [vmem:[%s21 + $0x28] sm:$0xf]
      %v2497 = vld [vmem:[%s21 + $0x2c] sm:$0xf]
      %v2498 = vld [vmem:[%s21 + $0x30] sm:$0xf]
      %v2499 = vld [vmem:[%s21 + $0x34] sm:$0xf]
      %v2500 = vld [vmem:[%s21 + $0x38] sm:$0xf]
      %v2501 = vld [vmem:[%s21 + $0x3c] sm:$0xf]
      %v2502 = vld [vmem:[%s22] sm:$0x1]
      %v2504 = vlaneseq
      %v2505 = vshrl.u32 %v2504, 7
      %v2506 = vsub.s32 0, %v2505
      %v2507 = vrot.slane %v2502, %v2506
      %v2525 = vunpack.c.l.b16 %v2486
      %v2526 = vunpack.c.l.b16 %v2487
      %v2527 = vunpack.c.l.b16 %v2488
      %v2528 = vunpack.c.l.b16 %v2489
      %v2529 = vunpack.c.l.b16 %v2490
      %v2530 = vunpack.c.l.b16 %v2491
      %v2531 = vunpack.c.l.b16 %v2492
      %v2532 = vunpack.c.l.b16 %v2493
      %v2533 = vunpack.c.l.b16 %v2494
      %v2534 = vunpack.c.l.b16 %v2495
      %v2535 = vunpack.c.l.b16 %v2496
      %v2536 = vunpack.c.l.b16 %v2497
      %v2537 = vunpack.c.l.b16 %v2498
      %v2538 = vunpack.c.l.b16 %v2499
      %v2539 = vunpack.c.l.b16 %v2500
      %v2540 = vunpack.c.l.b16 %v2501
      %v2541 = vpack.c.b16 %v2526, %v2525
      %v2542 = vpack.c.b16 %v2528, %v2527
      %v2543 = vpack.c.b16 %v2530, %v2529
      %v2544 = vpack.c.b16 %v2532, %v2531
      %v2545 = vpack.c.b16 %v2534, %v2533
      %v2546 = vpack.c.b16 %v2536, %v2535
      %v2547 = vpack.c.b16 %v2538, %v2537
      %v2548 = vpack.c.b16 %v2540, %v2539
      %2557 = vmatprep.subr.bf16.mxu0 0
      %2558 = vmatpush1.bf16.msra.mxu0 %v2541
      %2559 = vmatprep.subr.bf16.mxu0 0
      %2560 = vmatpush1.bf16.msra.mxu0 %v2542
      %2561 = vmatprep.subr.bf16.mxu0 0
      %2562 = vmatpush1.bf16.msra.mxu0 %v2543
      %2563 = vmatprep.subr.bf16.mxu0 0
      %2564 = vmatpush1.bf16.msra.mxu0 %v2544
      %2565 = vmatprep.subr.bf16.mxu0 0
      %2566 = vmatpush1.bf16.msra.mxu0 %v2545
      %2567 = vmatprep.subr.bf16.mxu0 0
      %2568 = vmatpush1.bf16.msra.mxu0 %v2546
      %2569 = vmatprep.subr.bf16.mxu0 0
      %2570 = vmatpush1.bf16.msra.mxu0 %v2547
      %2571 = vmatprep.subr.bf16.mxu0 0
      %2572 = vmatpush1.bf16.msra.mxu0 %v2548
      %2573 = vmatprep.subr.bf16.mxu0 0
      %2574 = vmatpush1.bf16.msra.mxu0 0
      %2575 = vmatprep.subr.bf16.mxu0 0
      %2576 = vmatpush1.bf16.msra.mxu0 0
      %2577 = vmatprep.subr.bf16.mxu0 0
      %2578 = vmatpush1.bf16.msra.mxu0 0
      %2579 = vmatprep.subr.bf16.mxu0 0
      %2580 = vmatpush1.bf16.msra.mxu0 0
      %2581 = vmatprep.subr.bf16.mxu0 0
      %2582 = vmatpush1.bf16.msra.mxu0 0
      %2583 = vmatprep.subr.bf16.mxu0 0
      %2584 = vmatpush1.bf16.msra.mxu0 0
      %2585 = vmatprep.subr.bf16.mxu0 0
      %2586 = vmatpush1.bf16.msra.mxu0 0
      %2587 = vmatprep.subr.bf16.mxu0 0
      %2588 = vmatpush1.bf16.msra.mxu0 0
      %2589 = vmatprep.mubr.bf16.mxu0 0
      %2590 = vmatmul.mubr.bf16.gmra.mrb[0].mxu0 %v2484
      %v2591 = vpop.f32.mrb[0].mxu0
      %v2592 = vadd.f32 %v2507, %v2591
      %v2593 = vpop.f32.mrb[0].mxu0
      %v2594 = vpop.f32.mrb[0].mxu0
      %v2595 = vadd.f32 %v2507, %v2594
      %v2596 = vpop.f32.mrb[0].mxu0
      %2597 = vmatprep.mubr.bf16.mxu0 0
      %2598 = vmatmul.mubr.bf16.gmra.mrb[0].mxu0 %v2485
      %v2599 = vpop.f32.mrb[0].mxu0
      %v2600 = vadd.f32 %v2507, %v2599
      %v2601 = vpop.f32.mrb[0].mxu0
      %v2602 = vpop.f32.mrb[0].mxu0
      %v2603 = vadd.f32 %v2507, %v2602
      %v2604 = vpop.f32.mrb[0].mxu0
      %2605 = vdwg.mxu0
      %vm2606 = vcmp.gt.f32.partialorder %v2592, 0.0
      %vm2607 = vcmp.gt.f32.partialorder %v2595, 0.0
      %vm2608 = vcmp.gt.f32.partialorder %v2600, 0.0
      %vm2609 = vcmp.gt.f32.partialorder %v2603, 0.0
      %v2610 = vmul.f32 %v2592, 0.2
      %v2611 = vmul.f32 %v2595, 0.2
      %v2612 = vmul.f32 %v2600, 0.2
      %v2613 = vmul.f32 %v2603, 0.2
      %v2614 = vsel %vm2606, %v2592, %v2610
      %v2615 = vsel %vm2607, %v2595, %v2611
      %v2616 = vsel %vm2608, %v2600, %v2612
      %v2617 = vsel %vm2609, %v2603, %v2613
      %v2618 = vpack.c.bf16 %v2615, %v2614
      %v2619 = vpack.c.bf16 %v2617, %v2616
      %v2620 = vld [vmem:[%s23] sm:$0xf]
      %v2621 = vld [vmem:[%s23 + $0x4] sm:$0xf]
      %v2622 = vld [vmem:[%s23 + $0x8] sm:$0xf]
      %v2623 = vld [vmem:[%s23 + $0xc] sm:$0xf]
      %v2624 = vld [vmem:[%s23 + $0x10] sm:$0xf]
      %v2625 = vld [vmem:[%s23 + $0x14] sm:$0xf]
      %v2626 = vld [vmem:[%s23 + $0x18] sm:$0xf]
      %v2627 = vld [vmem:[%s23 + $0x1c] sm:$0xf]
      %v2628 = vld [vmem:[%s23 + $0x20] sm:$0xf]
      %v2629 = vld [vmem:[%s23 + $0x24] sm:$0xf]
      %v2630 = vld [vmem:[%s23 + $0x28] sm:$0xf]
      %v2631 = vld [vmem:[%s23 + $0x2c] sm:$0xf]
      %v2632 = vld [vmem:[%s23 + $0x30] sm:$0xf]
      %v2633 = vld [vmem:[%s23 + $0x34] sm:$0xf]
      %v2634 = vld [vmem:[%s23 + $0x38] sm:$0xf]
      %v2635 = vld [vmem:[%s23 + $0x3c] sm:$0xf]
      %v2636 = vld [vmem:[%s24] sm:$0x1]
      %v2638 = vlaneseq
      %v2639 = vshrl.u32 %v2638, 7
      %v2640 = vsub.s32 0, %v2639
      %v2641 = vrot.slane %v2636, %v2640
      %v2659 = vunpack.c.l.b16 %v2620
      %v2660 = vunpack.c.l.b16 %v2621
      %v2661 = vunpack.c.l.b16 %v2622
      %v2662 = vunpack.c.l.b16 %v2623
      %v2663 = vunpack.c.l.b16 %v2624
      %v2664 = vunpack.c.l.b16 %v2625
      %v2665 = vunpack.c.l.b16 %v2626
      %v2666 = vunpack.c.l.b16 %v2627
      %v2667 = vunpack.c.l.b16 %v2628
      %v2668 = vunpack.c.l.b16 %v2629
      %v2669 = vunpack.c.l.b16 %v2630
      %v2670 = vunpack.c.l.b16 %v2631
      %v2671 = vunpack.c.l.b16 %v2632
      %v2672 = vunpack.c.l.b16 %v2633
      %v2673 = vunpack.c.l.b16 %v2634
      %v2674 = vunpack.c.l.b16 %v2635
      %v2675 = vpack.c.b16 %v2660, %v2659
      %v2676 = vpack.c.b16 %v2662, %v2661
      %v2677 = vpack.c.b16 %v2664, %v2663
      %v2678 = vpack.c.b16 %v2666, %v2665
      %v2679 = vpack.c.b16 %v2668, %v2667
      %v2680 = vpack.c.b16 %v2670, %v2669
      %v2681 = vpack.c.b16 %v2672, %v2671
      %v2682 = vpack.c.b16 %v2674, %v2673
      %2691 = vmatprep.subr.bf16.mxu0 0
      %2692 = vmatpush1.bf16.msra.mxu0 %v2675
      %2693 = vmatprep.subr.bf16.mxu0 0
      %2694 = vmatpush1.bf16.msra.mxu0 %v2676
      %2695 = vmatprep.subr.bf16.mxu0 0
      %2696 = vmatpush1.bf16.msra.mxu0 %v2677
      %2697 = vmatprep.subr.bf16.mxu0 0
      %2698 = vmatpush1.bf16.msra.mxu0 %v2678
      %2699 = vmatprep.subr.bf16.mxu0 0
      %2700 = vmatpush1.bf16.msra.mxu0 %v2679
      %2701 = vmatprep.subr.bf16.mxu0 0
      %2702 = vmatpush1.bf16.msra.mxu0 %v2680
      %2703 = vmatprep.subr.bf16.mxu0 0
      %2704 = vmatpush1.bf16.msra.mxu0 %v2681
      %2705 = vmatprep.subr.bf16.mxu0 0
      %2706 = vmatpush1.bf16.msra.mxu0 %v2682
      %2707 = vmatprep.subr.bf16.mxu0 0
      %2708 = vmatpush1.bf16.msra.mxu0 0
      %2709 = vmatprep.subr.bf16.mxu0 0
      %2710 = vmatpush1.bf16.msra.mxu0 0
      %2711 = vmatprep.subr.bf16.mxu0 0
      %2712 = vmatpush1.bf16.msra.mxu0 0
      %2713 = vmatprep.subr.bf16.mxu0 0
      %2714 = vmatpush1.bf16.msra.mxu0 0
      %2715 = vmatprep.subr.bf16.mxu0 0
      %2716 = vmatpush1.bf16.msra.mxu0 0
      %2717 = vmatprep.subr.bf16.mxu0 0
      %2718 = vmatpush1.bf16.msra.mxu0 0
      %2719 = vmatprep.subr.bf16.mxu0 0
      %2720 = vmatpush1.bf16.msra.mxu0 0
      %2721 = vmatprep.subr.bf16.mxu0 0
      %2722 = vmatpush1.bf16.msra.mxu0 0
      %2723 = vmatprep.mubr.bf16.mxu0 0
      %2724 = vmatmul.mubr.bf16.gmra.mrb[0].mxu0 %v2618
      %v2725 = vpop.f32.mrb[0].mxu0
      %v2726 = vadd.f32 %v2641, %v2725
      %v2727 = vpop.f32.mrb[0].mxu0
      %v2728 = vpop.f32.mrb[0].mxu0
      %v2729 = vadd.f32 %v2641, %v2728
      %v2730 = vpop.f32.mrb[0].mxu0
      %2731 = vmatprep.mubr.bf16.mxu0 0
      %2732 = vmatmul.mubr.bf16.gmra.mrb[0].mxu0 %v2619
      %v2733 = vpop.f32.mrb[0].mxu0
      %v2734 = vadd.f32 %v2641, %v2733
      %v2735 = vpop.f32.mrb[0].mxu0
      %v2736 = vpop.f32.mrb[0].mxu0
      %v2737 = vadd.f32 %v2641, %v2736
      %v2738 = vpop.f32.mrb[0].mxu0
      %2739 = vdwg.mxu0
      %vm2740 = vcmp.gt.f32.partialorder %v2726, 0.0
      %vm2741 = vcmp.gt.f32.partialorder %v2729, 0.0
      %vm2742 = vcmp.gt.f32.partialorder %v2734, 0.0
      %vm2743 = vcmp.gt.f32.partialorder %v2737, 0.0
      %v2744 = vmul.f32 %v2726, 0.2
      %v2745 = vmul.f32 %v2729, 0.2
      %v2746 = vmul.f32 %v2734, 0.2
      %v2747 = vmul.f32 %v2737, 0.2
      %v2748 = vsel %vm2740, %v2726, %v2744
      %v2749 = vsel %vm2741, %v2729, %v2745
      %v2750 = vsel %vm2742, %v2734, %v2746
      %v2751 = vsel %vm2743, %v2737, %v2747
      %2752 = vst [vmem:[%s768] sm:$0xff] %v2090
      %2753 = vst [vmem:[%s768 + $0x8] sm:$0xff] %v1426
      %2754 = vst [vmem:[%s768 + $0x10] sm:$0xff] %v2748
      %2755 = vst [vmem:[%s768 + $0x18] sm:$0xff] %v2092
      %2756 = vst [vmem:[%s768 + $0x20] sm:$0xff] %v1427
      %2757 = vst [vmem:[%s768 + $0x28] sm:$0xff] %v2749
      %2758 = vst [vmem:[%s768 + $0x30] sm:$0xff] %v2094
      %2759 = vst [vmem:[%s768 + $0x38] sm:$0xff] %v1428
      %2760 = vst [vmem:[%s768 + $0x40] sm:$0xff] %v2750
      %2761 = vst [vmem:[%s768 + $0x48] sm:$0xff] %v2096
      %2762 = vst [vmem:[%s768 + $0x50] sm:$0xff] %v1429
      %2763 = vst [vmem:[%s768 + $0x58] sm:$0xff] %v2751
      %s2764 = smul.u32 4, %s36
      %p2765 = scmp.lt.s32.totalorder %s2764, 7
      %s2766 = scalar_select %p2765, %s2764, 7
      %s2767 = smul.addr %s2766, 3
      %s2768 = smul.addr %s2767, 8
      %s2769 = scalar_lea.vmem %s25, %s2768
      // Predicated region
      $region121: #{autoencoder_forward.1} parent=119 // pred_check
        %p2770 = pneg %p584
      $region122: #{autoencoder_forward.1} parent=119 // pred_check_branch
        %2772 = sbr.rel (%p2770) target = $region124
      $region123: #{autoencoder_forward.1} parent=119 // pred_region
        %s2773 = smul.u32 4, %s36
      $region124: #{autoencoder_forward.1} parent=119 // pred_fallthru
        _
    $region120: #{autoencoder_forward.1} parent=5 // pred_fallthru
      _
    %p2774 = scmp.le.s32.totalorder 2, %s31
    // Predicated region
    $region125: #{autoencoder_forward.1} parent=5 // pred_check
      %p2775 = pneg %p2774
    $region126: #{autoencoder_forward.1} parent=5 // pred_check_branch
      %2777 = sbr.rel (%p2775) target = $region128
    $region127: #{autoencoder_forward.1} parent=5 // pred_region
      %s2778 = ssub.s32 %s31, 2
      // Predicated region
      $region129: #{autoencoder_forward.1} parent=127 // pred_check
        %p2779 = pneg %p590
      $region130: #{autoencoder_forward.1} parent=127 // pred_check_branch
        %2781 = sbr.rel (%p2779) target = $region132
      $region131: #{autoencoder_forward.1} parent=127 // pred_region
        %s2782 = smul.u32 4, %s37
        %p2783 = scmp.lt.s32.totalorder %s2782, 7
        %s2784 = scalar_select %p2783, %s2782, 7
        %s2785 = smul.addr %s2784, 3
        %s2786 = smul.addr %s2785, 8
        %s2787 = scalar_lea.vmem %s25, %s2786
      $region132: #{autoencoder_forward.1} parent=127 // pred_fallthru
        _
    $region128: #{autoencoder_forward.1} parent=5 // pred_fallthru
      _
  $region6: #{autoencoder_forward.1} parent=0 // loop_footer
    %s35 = sadd.s32 1, %s31
  $region7: #{autoencoder_forward.1} parent=0 // loop_footer_branch
    %30 = sbr.rel target = $region3
  $region8: #{autoencoder_forward.1} parent=0 // loop_exit
    _

</llo_original>
